<compile_context>
chip_gen: v7x
topology: tpu7x:2x2x1
jax: 0.10.0
libtpu: 0.0.40
codegen_flags: <defaults>
</compile_context>

<pallas_src>
import math

import jax
import jax.numpy as jnp
from jax import lax
from jax.experimental import pallas as pl
from jax.experimental.pallas import tpu as pltpu


def make_score_mlp_kernel(num_fc_layers, compute_dtype):
    """Kernel argument order:
         emb_0..emb_4,                       # (TILE_B, emb_dim) each, compute_dtype
         w1t, b1t,                           # (H1, 5*emb_dim) compute_dtype, (H1, 1) f32
         [wt_l, bt_l] * (num_fc_layers-1),   # (H_out, H_in) compute_dtype, (H_out, 1) f32
         wo, bo,                             # (H_last, 1) f32, (1, 1) f32
         out_ref                             # (1, TILE_B) f32
    Activations live transposed as (features, TILE_B): batch on lanes,
    lane-dense output block.
    """

    def kernel(*refs):
        emb_refs = refs[:5]
        out_ref = refs[-1]
        p = refs[5:-1]

        # --- First fc layer: fused concat + single K = 5*emb_dim MXU dot. ---
        x_cat = jnp.concatenate([e[...] for e in emb_refs], axis=-1)  # (TILE_B, 5*emb)
        acc = lax.dot_general(
            p[0][...],                       # (H1, 5*emb_dim)
            x_cat,                           # (TILE_B, 5*emb_dim)
            dimension_numbers=(((1,), (1,)), ((), ())),
            preferred_element_type=jnp.float32,
        )                                    # -> (H1, TILE_B)
        h = jnp.maximum(acc + p[1][...], 0.0)  # bias (H1,1) broadcasts over lanes

        # --- Remaining fc layers: Linear + ReLU in transposed layout. ---
        idx = 2
        for _ in range(num_fc_layers - 1):
            w_ref, b_ref = p[idx], p[idx + 1]
            idx += 2
            h = jnp.maximum(
                jnp.dot(w_ref[...], h.astype(compute_dtype),
                        preferred_element_type=jnp.float32)
                + b_ref[...],
                0.0,
            )

        # --- affine_output (out_features=1): VPU multiply + sublane reduce. ---
        wo_ref, bo_ref = p[idx], p[idx + 1]  # (H_last, 1), (1, 1)
        logits = jnp.sum(h * wo_ref[...], axis=0, keepdims=True) + bo_ref[...]

        # --- logistic; lane-dense (1, TILE_B) store. ---
        out_ref[...] = jax.nn.sigmoid(logits).astype(out_ref.dtype)

    return kernel


def _choose_tile_b(B, tile_b):
    """Large lane-aligned batch tiles; keep >= 2 grid steps when B allows (v7x)."""
    if B <= 512:
        return B                              # single full-extent tile (legal for any B)
    ALIGN = 512                               # multiple of 256: fills MXU N on v6e/v7x
    max_two_step = (B // 2 // ALIGN) * ALIGN  # largest tile that still gives >= 2 steps
    tile = min(tile_b, max(max_two_step, ALIGN), B)
    return max(ALIGN, (tile // ALIGN) * ALIGN)


def score_mlp_forward(source_emb, dest_emb, times_emb, interval_emb, conn_emb,
                      params, *, tile_b=4096, compute_dtype=jnp.bfloat16,
                      emb_buffers=2):
    """params: flat list [W1, b1, W2, b2, ..., W_out, b_out] with W stored as
    (in_features, out_features) (PyTorch weight.T) and b as (1, out_features).
    Returns rating of shape (B, 1)."""
    embs = (source_emb, dest_emb, times_emb, interval_emb, conn_emb)
    B, emb_dim = source_emb.shape
    num_fc = (len(params) - 2) // 2

    # ---- One-time tiny parameter re-layout (resident in VMEM across tiles) ----
    w1, b1 = params[0], params[1]
    assert w1.shape[0] == 5 * emb_dim
    kparams = [w1.T.astype(compute_dtype),            # (H1, 5*emb_dim) fused first weight
               b1.T.astype(jnp.float32)]              # (H1, 1)  (bias stays f32)
    for layer in range(1, num_fc):
        w, b = params[2 * layer], params[2 * layer + 1]
        kparams.extend([w.T.astype(compute_dtype),    # (out, in)
                        b.T.astype(jnp.float32)])     # (out, 1)
    wo, bo = params[-2], params[-1]
    kparams.extend([wo.astype(jnp.float32),           # (H_last, 1)
                    bo.astype(jnp.float32)])          # (1, 1)

    # Stream embeddings in the compute dtype (bf16 halves HBM traffic).
    embs = tuple(e.astype(compute_dtype) for e in embs)

    # ---- Batch tiling ----
    tile = _choose_tile_b(B, tile_b)
    grid = (pl.cdiv(B, tile),)

    emb_kwargs = {}
    if emb_buffers != 2:                               # e.g. 3 on v5e if DMA is exposed
        emb_kwargs = dict(pipeline_mode=pl.Buffered(emb_buffers))
    emb_spec = pl.BlockSpec((tile, emb_dim), lambda i: (i, 0), **emb_kwargs)
    param_specs = [pl.BlockSpec(p.shape, lambda i: (0, 0)) for p in kparams]
    out_spec = pl.BlockSpec((1, tile), lambda i: (0, i))   # lane-dense output

    # ---- Advisory cost estimate (helps XLA overlap; essentially free) ----
    layer_dims, prev = [], 5 * emb_dim
    for layer in range(num_fc):
        out_f = params[2 * layer].shape[1]
        layer_dims.append((prev, out_f))
        prev = out_f
    layer_dims.append((prev, 1))
    flops = 2 * B * sum(i * o for i, o in layer_dims)
    bytes_accessed = (B * (5 * emb_dim * embs[0].dtype.itemsize + 4)
                      + sum(int(p.size) * p.dtype.itemsize for p in kparams))
    cost = pl.CostEstimate(flops=flops, transcendentals=B,
                           bytes_accessed=bytes_accessed)

    kernel = make_score_mlp_kernel(num_fc, compute_dtype)
    out_t = pl.pallas_call(
        kernel,
        out_shape=jax.ShapeDtypeStruct((1, B), jnp.float32),
        grid=grid,
        in_specs=[emb_spec] * 5 + param_specs,
        out_specs=out_spec,
        compiler_params=pltpu.CompilerParams(
            dimension_semantics=("parallel",),
        ),
        cost_estimate=cost,
    )(*embs, *kparams)

    # (1, B) lane-dense kernel output -> (B, 1) to match the PyTorch module.
    return out_t.reshape(B, 1)


# ----------------------------- reference & init -----------------------------

def score_mlp_reference(source, dest, times, interval, conn, params):
    x = jnp.concatenate([source, dest, times, interval, conn], axis=-1)
    num_fc = (len(params) - 2) // 2
    h = x
    for i in range(num_fc):
        h = jnp.maximum(h @ params[2 * i] + params[2 * i + 1], 0.0)
    logits = h @ params[-2] + params[-1]
    return jax.nn.sigmoid(logits)


def init_linear_params(key, in_features, out_features):
    """Deterministic init mimicking PyTorch nn.Linear default (uniform +/- 1/sqrt(in))."""
    k_w, k_b = jax.random.split(key)
    bound = 1.0 / math.sqrt(in_features)
    w = jax.random.uniform(
        k_w, (in_features, out_features), jnp.float32, minval=-bound, maxval=bound
    )
    b = jax.random.uniform(
        k_b, (1, out_features), jnp.float32, minval=-bound, maxval=bound
    )
    return w, b


def build_params(key, score_mlp_layers):
    params = []
    keys = jax.random.split(key, len(score_mlp_layers))
    for i, (in_size, out_size) in enumerate(
        zip(score_mlp_layers[:-1], score_mlp_layers[1:])
    ):
        w, b = init_linear_params(keys[i], in_size, out_size)
        params.extend([w, b])
    w_out, b_out = init_linear_params(keys[-1], score_mlp_layers[-1], 1)
    params.extend([w_out, b_out])
    return params


if __name__ == "__main__":
    # config: 5 embeddings of dim 16 each -> 80 input features; MLP 80->64->32->1
    emb_dim = 16
    batch = 1024  # small demo batch; exercises a 2-step pipelined grid (tile 512)
    config = {"score_mlp_layers": [5 * emb_dim, 64, 32]}

    key = jax.random.PRNGKey(0)
    k_params, k_s, k_d, k_t, k_i, k_c = jax.random.split(key, 6)

    params = build_params(k_params, config["score_mlp_layers"])

    source_embedding = jax.random.normal(k_s, (batch, emb_dim), jnp.float32)
    destination_embedding = jax.random.normal(k_d, (batch, emb_dim), jnp.float32)
    times_embedding = jax.random.normal(k_t, (batch, emb_dim), jnp.float32)
    interval_embedding = jax.random.normal(k_i, (batch, emb_dim), jnp.float32)
    connection_embedding = jax.random.normal(k_c, (batch, emb_dim), jnp.float32)

    ref = score_mlp_reference(
        source_embedding, destination_embedding, times_embedding,
        interval_embedding, connection_embedding, params,
    )

    # Default path: bf16-streamed embeddings/weights, f32 accumulation.
    rating = score_mlp_forward(
        source_embedding, destination_embedding, times_embedding,
        interval_embedding, connection_embedding, params,
    )
    rating = jax.block_until_ready(rating)
    assert rating.shape == (batch, 1)
    assert bool(jnp.all((rating >= 0.0) & (rating <= 1.0)))
    assert jnp.allclose(rating, ref, rtol=2e-2, atol=5e-3), float(
        jnp.max(jnp.abs(rating - ref))
    )

    # f32 path: numerically faithful to the PyTorch module.
    rating_f32 = score_mlp_forward(
        source_embedding, destination_embedding, times_embedding,
        interval_embedding, connection_embedding, params,
        compute_dtype=jnp.float32,
    )
    rating_f32 = jax.block_until_ready(rating_f32)
    assert jnp.allclose(rating_f32, ref, rtol=1e-5, atol=1e-5), float(
        jnp.max(jnp.abs(rating_f32 - ref))
    )

    print("KERNEL_OK")
</pallas_src>

<mosaic_0001>
module attributes {stable_mosaic.version = 11 : i64} {
  func.func @kernel(%arg0: i32, %arg1: memref<512x16xbf16, #tpu.memory_space<vmem>>, %arg2: memref<512x16xbf16, #tpu.memory_space<vmem>>, %arg3: memref<512x16xbf16, #tpu.memory_space<vmem>>, %arg4: memref<512x16xbf16, #tpu.memory_space<vmem>>, %arg5: memref<512x16xbf16, #tpu.memory_space<vmem>>, %arg6: memref<64x80xbf16, #tpu.memory_space<vmem>>, %arg7: memref<64x1xf32, #tpu.memory_space<vmem>>, %arg8: memref<32x64xbf16, #tpu.memory_space<vmem>>, %arg9: memref<32x1xf32, #tpu.memory_space<vmem>>, %arg10: memref<32x1xf32, #tpu.memory_space<vmem>>, %arg11: memref<1x1xf32, #tpu.memory_space<vmem>>, %arg12: memref<1x512xf32, #tpu.memory_space<vmem>>) attributes {dimension_semantics = [#tpu.dimension_semantics<parallel>], iteration_bounds = array<i64: 2>, scalar_prefetch = 0 : i64, scratch_operands = 0 : i64, tpu.core_type = #tpu.core_type<tc>, window_params = [{transform_indices = @transform_0, window_bounds = array<i64: 512, 16>}, {transform_indices = @transform_1, window_bounds = array<i64: 512, 16>}, {transform_indices = @transform_2, window_bounds = array<i64: 512, 16>}, {transform_indices = @transform_3, window_bounds = array<i64: 512, 16>}, {transform_indices = @transform_4, window_bounds = array<i64: 512, 16>}, {pipeline_mode = #tpu.pipeline_mode<synchronous>, transform_indices = @transform_5, window_bounds = array<i64: 64, 80>}, {pipeline_mode = #tpu.pipeline_mode<synchronous>, transform_indices = @transform_6, window_bounds = array<i64: 64, 1>}, {pipeline_mode = #tpu.pipeline_mode<synchronous>, transform_indices = @transform_7, window_bounds = array<i64: 32, 64>}, {pipeline_mode = #tpu.pipeline_mode<synchronous>, transform_indices = @transform_8, window_bounds = array<i64: 32, 1>}, {pipeline_mode = #tpu.pipeline_mode<synchronous>, transform_indices = @transform_9, window_bounds = array<i64: 32, 1>}, {pipeline_mode = #tpu.pipeline_mode<synchronous>, transform_indices = @transform_10, window_bounds = array<i64: 1, 1>}, {transform_indices = @transform_11, window_bounds = array<i64: 1, 512>}]} {
    %c0 = arith.constant 0 : index
    %c0_0 = arith.constant 0 : index
    %0 = vector.load %arg1[%c0, %c0_0] : memref<512x16xbf16, #tpu.memory_space<vmem>>, vector<512x16xbf16>
    %c0_1 = arith.constant 0 : index
    %c0_2 = arith.constant 0 : index
    %1 = vector.load %arg2[%c0_1, %c0_2] : memref<512x16xbf16, #tpu.memory_space<vmem>>, vector<512x16xbf16>
    %c0_3 = arith.constant 0 : index
    %c0_4 = arith.constant 0 : index
    %2 = vector.load %arg3[%c0_3, %c0_4] : memref<512x16xbf16, #tpu.memory_space<vmem>>, vector<512x16xbf16>
    %c0_5 = arith.constant 0 : index
    %c0_6 = arith.constant 0 : index
    %3 = vector.load %arg4[%c0_5, %c0_6] : memref<512x16xbf16, #tpu.memory_space<vmem>>, vector<512x16xbf16>
    %c0_7 = arith.constant 0 : index
    %c0_8 = arith.constant 0 : index
    %4 = vector.load %arg5[%c0_7, %c0_8] : memref<512x16xbf16, #tpu.memory_space<vmem>>, vector<512x16xbf16>
    %5 = tpu.concatenate %0, %1, %2, %3, %4 in 1 : vector<512x16xbf16>, vector<512x16xbf16>, vector<512x16xbf16>, vector<512x16xbf16>, vector<512x16xbf16> -> vector<512x80xbf16>
    %c0_9 = arith.constant 0 : index
    %c0_10 = arith.constant 0 : index
    %6 = vector.load %arg6[%c0_9, %c0_10] : memref<64x80xbf16, #tpu.memory_space<vmem>>, vector<64x80xbf16>
    %cst = arith.constant dense<0.000000e+00> : vector<64x512xf32>
    %7 = tpu.matmul %6, %5, %cst {dimension_numbers = #tpu.dot_dimension_numbers<[1], [1], [0], [0], [0, 0, 1, 0], [], []>} : vector<64x80xbf16>, vector<512x80xbf16>, vector<64x512xf32> -> vector<64x512xf32>
    %c0_11 = arith.constant 0 : index
    %c0_12 = arith.constant 0 : index
    %8 = vector.load %arg7[%c0_11, %c0_12] : memref<64x1xf32, #tpu.memory_space<vmem>>, vector<64x1xf32>
    %9 = vector.broadcast %8 : vector<64x1xf32> to vector<64x512xf32>
    %10 = arith.addf %7, %9 : vector<64x512xf32>
    %cst_13 = arith.constant 0.000000e+00 : f32
    %11 = vector.broadcast %cst_13 : f32 to vector<64x512xf32>
    %12 = arith.maximumf %10, %11 : vector<64x512xf32>
    %c0_14 = arith.constant 0 : index
    %c0_15 = arith.constant 0 : index
    %13 = vector.load %arg8[%c0_14, %c0_15] : memref<32x64xbf16, #tpu.memory_space<vmem>>, vector<32x64xbf16>
    %14 = arith.truncf %12 : vector<64x512xf32> to vector<64x512xbf16>
    %cst_16 = arith.constant dense<0.000000e+00> : vector<32x512xf32>
    %15 = tpu.matmul %13, %14, %cst_16 {dimension_numbers = #tpu.dot_dimension_numbers<[1], [0], [0], [1], [0, 0, 1, 1], [], []>} : vector<32x64xbf16>, vector<64x512xbf16>, vector<32x512xf32> -> vector<32x512xf32>
    %c0_17 = arith.constant 0 : index
    %c0_18 = arith.constant 0 : index
    %16 = vector.load %arg9[%c0_17, %c0_18] : memref<32x1xf32, #tpu.memory_space<vmem>>, vector<32x1xf32>
    %17 = vector.broadcast %16 : vector<32x1xf32> to vector<32x512xf32>
    %18 = arith.addf %15, %17 : vector<32x512xf32>
    %cst_19 = arith.constant 0.000000e+00 : f32
    %19 = vector.broadcast %cst_19 : f32 to vector<32x512xf32>
    %20 = arith.maximumf %18, %19 : vector<32x512xf32>
    %c0_20 = arith.constant 0 : index
    %c0_21 = arith.constant 0 : index
    %21 = vector.load %arg10[%c0_20, %c0_21] : memref<32x1xf32, #tpu.memory_space<vmem>>, vector<32x1xf32>
    %22 = vector.broadcast %21 : vector<32x1xf32> to vector<32x512xf32>
    %23 = arith.mulf %20, %22 : vector<32x512xf32>
    %cst_22 = arith.constant dense<0.000000e+00> : vector<512xf32>
    %24 = vector.multi_reduction <add>, %23, %cst_22 [0] : vector<32x512xf32> to vector<512xf32>
    %25 = vector.shape_cast %24 : vector<512xf32> to vector<1x512xf32>
    %c0_23 = arith.constant 0 : index
    %c0_24 = arith.constant 0 : index
    %26 = vector.load %arg11[%c0_23, %c0_24] : memref<1x1xf32, #tpu.memory_space<vmem>>, vector<1x1xf32>
    %27 = vector.broadcast %26 : vector<1x1xf32> to vector<1x512xf32>
    %28 = arith.addf %25, %27 : vector<1x512xf32>
    %29 = arith.negf %28 : vector<1x512xf32>
    %30 = math.exp %29 : vector<1x512xf32>
    %cst_25 = arith.constant 1.000000e+00 : f32
    %31 = vector.broadcast %cst_25 : f32 to vector<1x512xf32>
    %32 = arith.addf %31, %30 : vector<1x512xf32>
    %33 = arith.divf %31, %32 : vector<1x512xf32>
    %c0_26 = arith.constant 0 : index
    %c0_27 = arith.constant 0 : index
    %34 = vector.load %arg12[%c0_26, %c0_27] : memref<1x512xf32, #tpu.memory_space<vmem>>, vector<1x512xf32>
    tpu.vector_store %arg12[%c0_26, %c0_27], %33 {strides = array<i32>} : memref<1x512xf32, #tpu.memory_space<vmem>>, vector<1x512xf32>,
    return
  }
  func.func @transform_0(%arg0: i32) -> (i32, i32) {
    %c0_i32 = arith.constant 0 : i32
    %c0_i32_0 = arith.constant 0 : i32
    return %arg0, %c0_i32 : i32, i32
  }
  func.func @transform_1(%arg0: i32) -> (i32, i32) {
    %c0_i32 = arith.constant 0 : i32
    %c0_i32_0 = arith.constant 0 : i32
    return %arg0, %c0_i32 : i32, i32
  }
  func.func @transform_2(%arg0: i32) -> (i32, i32) {
    %c0_i32 = arith.constant 0 : i32
    %c0_i32_0 = arith.constant 0 : i32
    return %arg0, %c0_i32 : i32, i32
  }
  func.func @transform_3(%arg0: i32) -> (i32, i32) {
    %c0_i32 = arith.constant 0 : i32
    %c0_i32_0 = arith.constant 0 : i32
    return %arg0, %c0_i32 : i32, i32
  }
  func.func @transform_4(%arg0: i32) -> (i32, i32) {
    %c0_i32 = arith.constant 0 : i32
    %c0_i32_0 = arith.constant 0 : i32
    return %arg0, %c0_i32 : i32, i32
  }
  func.func @transform_5(%arg0: i32) -> (i32, i32) {
    %c0_i32 = arith.constant 0 : i32
    %c0_i32_0 = arith.constant 0 : i32
    %c0_i32_1 = arith.constant 0 : i32
    return %c0_i32, %c0_i32_0 : i32, i32
  }
  func.func @transform_6(%arg0: i32) -> (i32, i32) {
    %c0_i32 = arith.constant 0 : i32
    %c0_i32_0 = arith.constant 0 : i32
    %c0_i32_1 = arith.constant 0 : i32
    return %c0_i32, %c0_i32_0 : i32, i32
  }
  func.func @transform_7(%arg0: i32) -> (i32, i32) {
    %c0_i32 = arith.constant 0 : i32
    %c0_i32_0 = arith.constant 0 : i32
    %c0_i32_1 = arith.constant 0 : i32
    return %c0_i32, %c0_i32_0 : i32, i32
  }
  func.func @transform_8(%arg0: i32) -> (i32, i32) {
    %c0_i32 = arith.constant 0 : i32
    %c0_i32_0 = arith.constant 0 : i32
    %c0_i32_1 = arith.constant 0 : i32
    return %c0_i32, %c0_i32_0 : i32, i32
  }
  func.func @transform_9(%arg0: i32) -> (i32, i32) {
    %c0_i32 = arith.constant 0 : i32
    %c0_i32_0 = arith.constant 0 : i32
    %c0_i32_1 = arith.constant 0 : i32
    return %c0_i32, %c0_i32_0 : i32, i32
  }
  func.func @transform_10(%arg0: i32) -> (i32, i32) {
    %c0_i32 = arith.constant 0 : i32
    %c0_i32_0 = arith.constant 0 : i32
    %c0_i32_1 = arith.constant 0 : i32
    return %c0_i32, %c0_i32_0 : i32, i32
  }
  func.func @transform_11(%arg0: i32) -> (i32, i32) {
    %c0_i32 = arith.constant 0 : i32
    %c0_i32_0 = arith.constant 0 : i32
    return %c0_i32, %arg0 : i32, i32
  }
}

</mosaic_0001>

<llo_original>
// kernel: tpu_custom_call.1
$region0: #{tpu_custom_call.1}
  #allocation0 [shape = 'u32[]', space=smem, size = 0x4, offset = 0x4, fixed_abs, tag = 'smem constant byte address 0x4 - core index']
  #allocation1 [shape = 'u32[144,128]{1,0:T(1,128)}', space=vmem, size = 0x12000, scoped, tag = 'internal scratch']
  #allocation2 [shape = 'f32[1,1]{1,0:T(1,128)S(1)}', space=vmem, size = 0x200, scoped, tag = 'scoped memory for tpu_custom_call.1']
  %s0 = inlined_call_operand.vmem [shape: bf16[1024,16], index: 0, kind: input, shape index: {}]
  %s1 = inlined_call_operand.vmem [shape: bf16[1024,16], index: 1, kind: input, shape index: {}]
  %s2 = inlined_call_operand.vmem [shape: bf16[1024,16], index: 2, kind: input, shape index: {}]
  %s3 = inlined_call_operand.vmem [shape: bf16[1024,16], index: 3, kind: input, shape index: {}]
  %s4 = inlined_call_operand.vmem [shape: bf16[1024,16], index: 4, kind: input, shape index: {}]
  %s5 = inlined_call_operand.vmem [shape: bf16[64,80], index: 5, kind: input, shape index: {}]
  %s6 = inlined_call_operand.vmem [shape: f32[64,1], index: 6, kind: input, shape index: {}]
  %s7 = inlined_call_operand.vmem [shape: bf16[32,64], index: 7, kind: input, shape index: {}]
  %s8 = inlined_call_operand.vmem [shape: f32[32,1], index: 8, kind: input, shape index: {}]
  %s9 = inlined_call_operand.vmem [shape: f32[32,1], index: 9, kind: input, shape index: {}]
  %s10 = inlined_call_operand.<no memory space> [shape: f32[1,1], index: 10, kind: input, shape index: {}]
  %s11 = inlined_call_operand.hbm [shape: f32[1,1024], index: 11, kind: output, shape index: {}]
  %s12 = sld [smem:[#allocation0]]
  $region77: #{tpu_custom_call.1} parent=0
    _
  %s14 = ssub.s32 1, %s12
  %s15 = scalar_select 0, %s14, %s12
  %v16 = vstv %s10
  %17 = vst [vmem:[#allocation2] sm:$0x1] %v16
  $region1: #{tpu_custom_call.1} parent=0
    #allocation3 [shape = 'u8[4096]{0}', space=vmem, size = 0x1000, scoped, tag = 'output window, operand 0']
    #allocation4 [shape = 's32[2]{0}', space=sflag, size = 0x8, scoped, tag = 'scoped memory for tpu_custom_call.1']
    %18 = vsyncpa [#allocation4], 0
    %s19 = scalar_lea.sflag [#allocation4], 1
    %20 = vsyncpa %s19, 0
    loop: start=0, step=1, limit=4
    $region2: #{tpu_custom_call.1} parent=1 // loop_pre_header
      _
    $region3: #{tpu_custom_call.1} parent=1 // loop_header
      %s22 = sphi 0, %s26
      %p23 = scmp.ge.s32.totalorder %s22, 4
      %s32 = sphi 0, %s34
      %s35 = sphi 0, %s32
      %s36 = sphi 0, %s35
      %s52 = sphi 0, %s36
      %s58 = sphi 0, %s60
      %s61 = sphi 0, %s58
      %s62 = sphi 0, %s61
      %s78 = sphi 0, %s62
      %s84 = sphi 0, %s86
      %s87 = sphi 0, %s84
      %s88 = sphi 0, %s87
      %s104 = sphi 0, %s88
      %s110 = sphi 0, %s112
      %s113 = sphi 0, %s110
      %s114 = sphi 0, %s113
      %s130 = sphi 0, %s114
      %s136 = sphi 0, %s138
      %s139 = sphi 0, %s136
      %s140 = sphi 0, %s139
      %s156 = sphi 0, %s140
      %s160 = sphi 0, %s160
      %s162 = sphi 0, %s160
      %s163 = sphi 0, %s162
      %s177 = sphi 0, %s163
      %s181 = sphi 0, %s181
      %s183 = sphi 0, %s181
      %s184 = sphi 0, %s183
      %s198 = sphi 0, %s184
      %s202 = sphi 0, %s202
      %s204 = sphi 0, %s202
      %s205 = sphi 0, %s204
      %s219 = sphi 0, %s205
      %s223 = sphi 0, %s223
      %s225 = sphi 0, %s223
      %s226 = sphi 0, %s225
      %s240 = sphi 0, %s226
      %s244 = sphi 0, %s244
      %s246 = sphi 0, %s244
      %s247 = sphi 0, %s246
      %s261 = sphi 0, %s247
      %s265 = sphi 0, %s265
      %s267 = sphi 0, %s265
      %s268 = sphi 0, %s267
      %s282 = sphi 0, %s268
      %s288 = sphi 0, %s290
      %s291 = sphi 0, %s288
      %s292 = sphi 0, %s291
      %s308 = sphi 0, %s292
    $region4: #{tpu_custom_call.1} parent=1 // loop_header_branch
      %25 = sbr.rel (%p23) target = $region8
    $region5: #{tpu_custom_call.1} parent=1 // loop_body
      %s27 = ssub.s32 %s22, 1
      %s28 = ssub.s32 %s22, 2
      %s29 = sadd.s32 %s22, 1
      %s30 = ssub.s32 %s22, %s29
      %p31 = scmp.eq.s32.totalorder %s30, 0
      %s33 = sadd.s32 %s32, 1
      %s34 = scalar_select %p31, %s32, %s33
      %p37 = pneg %p31
      %p38 = scmp.eq.s32.totalorder %s22, 1
      %p39 = por %p37, %p38
      %p40 = scmp.ne.s32.totalorder %s32, %s35
      %p41 = scmp.eq.s32.totalorder %s22, 0
      %p42 = por %p40, %p41
      %p43 = scmp.ne.s32.totalorder %s32, %s35
      %p44 = scmp.eq.s32.totalorder %s27, 1
      %p45 = por %p43, %p44
      %p46 = scmp.ne.s32.totalorder %s35, %s36
      %p47 = scmp.eq.s32.totalorder %s27, 0
      %p48 = por %p46, %p47
      %p49 = scmp.ne.s32.totalorder %s35, %s36
      %p50 = scmp.eq.s32.totalorder %s28, 1
      %p51 = por %p49, %p50
      %p53 = scmp.ne.s32.totalorder %s36, %s52
      %p54 = scmp.eq.s32.totalorder %s28, 0
      %p55 = por %p53, %p54
      %s56 = ssub.s32 %s22, %s29
      %p57 = scmp.eq.s32.totalorder %s56, 0
      %s59 = sadd.s32 %s58, 1
      %s60 = scalar_select %p57, %s58, %s59
      %p63 = pneg %p57
      %p64 = scmp.eq.s32.totalorder %s22, 1
      %p65 = por %p63, %p64
      %p66 = scmp.ne.s32.totalorder %s58, %s61
      %p67 = scmp.eq.s32.totalorder %s22, 0
      %p68 = por %p66, %p67
      %p69 = scmp.ne.s32.totalorder %s58, %s61
      %p70 = scmp.eq.s32.totalorder %s27, 1
      %p71 = por %p69, %p70
      %p72 = scmp.ne.s32.totalorder %s61, %s62
      %p73 = scmp.eq.s32.totalorder %s27, 0
      %p74 = por %p72, %p73
      %p75 = scmp.ne.s32.totalorder %s61, %s62
      %p76 = scmp.eq.s32.totalorder %s28, 1
      %p77 = por %p75, %p76
      %p79 = scmp.ne.s32.totalorder %s62, %s78
      %p80 = scmp.eq.s32.totalorder %s28, 0
      %p81 = por %p79, %p80
      %s82 = ssub.s32 %s22, %s29
      %p83 = scmp.eq.s32.totalorder %s82, 0
      %s85 = sadd.s32 %s84, 1
      %s86 = scalar_select %p83, %s84, %s85
      %p89 = pneg %p83
      %p90 = scmp.eq.s32.totalorder %s22, 1
      %p91 = por %p89, %p90
      %p92 = scmp.ne.s32.totalorder %s84, %s87
      %p93 = scmp.eq.s32.totalorder %s22, 0
      %p94 = por %p92, %p93
      %p95 = scmp.ne.s32.totalorder %s84, %s87
      %p96 = scmp.eq.s32.totalorder %s27, 1
      %p97 = por %p95, %p96
      %p98 = scmp.ne.s32.totalorder %s87, %s88
      %p99 = scmp.eq.s32.totalorder %s27, 0
      %p100 = por %p98, %p99
      %p101 = scmp.ne.s32.totalorder %s87, %s88
      %p102 = scmp.eq.s32.totalorder %s28, 1
      %p103 = por %p101, %p102
      %p105 = scmp.ne.s32.totalorder %s88, %s104
      %p106 = scmp.eq.s32.totalorder %s28, 0
      %p107 = por %p105, %p106
      %s108 = ssub.s32 %s22, %s29
      %p109 = scmp.eq.s32.totalorder %s108, 0
      %s111 = sadd.s32 %s110, 1
      %s112 = scalar_select %p109, %s110, %s111
      %p115 = pneg %p109
      %p116 = scmp.eq.s32.totalorder %s22, 1
      %p117 = por %p115, %p116
      %p118 = scmp.ne.s32.totalorder %s110, %s113
      %p119 = scmp.eq.s32.totalorder %s22, 0
      %p120 = por %p118, %p119
      %p121 = scmp.ne.s32.totalorder %s110, %s113
      %p122 = scmp.eq.s32.totalorder %s27, 1
      %p123 = por %p121, %p122
      %p124 = scmp.ne.s32.totalorder %s113, %s114
      %p125 = scmp.eq.s32.totalorder %s27, 0
      %p126 = por %p124, %p125
      %p127 = scmp.ne.s32.totalorder %s113, %s114
      %p128 = scmp.eq.s32.totalorder %s28, 1
      %p129 = por %p127, %p128
      %p131 = scmp.ne.s32.totalorder %s114, %s130
      %p132 = scmp.eq.s32.totalorder %s28, 0
      %p133 = por %p131, %p132
      %s134 = ssub.s32 %s22, %s29
      %p135 = scmp.eq.s32.totalorder %s134, 0
      %s137 = sadd.s32 %s136, 1
      %s138 = scalar_select %p135, %s136, %s137
      %p141 = pneg %p135
      %p142 = scmp.eq.s32.totalorder %s22, 1
      %p143 = por %p141, %p142
      %p144 = scmp.ne.s32.totalorder %s136, %s139
      %p145 = scmp.eq.s32.totalorder %s22, 0
      %p146 = por %p144, %p145
      %p147 = scmp.ne.s32.totalorder %s136, %s139
      %p148 = scmp.eq.s32.totalorder %s27, 1
      %p149 = por %p147, %p148
      %p150 = scmp.ne.s32.totalorder %s139, %s140
      %p151 = scmp.eq.s32.totalorder %s27, 0
      %p152 = por %p150, %p151
      %p153 = scmp.ne.s32.totalorder %s139, %s140
      %p154 = scmp.eq.s32.totalorder %s28, 1
      %p155 = por %p153, %p154
      %p157 = scmp.ne.s32.totalorder %s140, %s156
      %p158 = scmp.eq.s32.totalorder %s28, 0
      %p159 = por %p157, %p158
      %s161 = sadd.s32 %s160, 1
      %p164 = scmp.eq.s32.totalorder %s22, 1
      %p165 = scmp.ne.s32.totalorder %s160, %s162
      %p166 = scmp.eq.s32.totalorder %s22, 0
      %p167 = por %p165, %p166
      %p168 = scmp.ne.s32.totalorder %s160, %s162
      %p169 = scmp.eq.s32.totalorder %s27, 1
      %p170 = por %p168, %p169
      %p171 = scmp.ne.s32.totalorder %s162, %s163
      %p172 = scmp.eq.s32.totalorder %s27, 0
      %p173 = por %p171, %p172
      %p174 = scmp.ne.s32.totalorder %s162, %s163
      %p175 = scmp.eq.s32.totalorder %s28, 1
      %p176 = por %p174, %p175
      %p178 = scmp.ne.s32.totalorder %s163, %s177
      %p179 = scmp.eq.s32.totalorder %s28, 0
      %p180 = por %p178, %p179
      %s182 = sadd.s32 %s181, 1
      %p185 = scmp.eq.s32.totalorder %s22, 1
      %p186 = scmp.ne.s32.totalorder %s181, %s183
      %p187 = scmp.eq.s32.totalorder %s22, 0
      %p188 = por %p186, %p187
      %p189 = scmp.ne.s32.totalorder %s181, %s183
      %p190 = scmp.eq.s32.totalorder %s27, 1
      %p191 = por %p189, %p190
      %p192 = scmp.ne.s32.totalorder %s183, %s184
      %p193 = scmp.eq.s32.totalorder %s27, 0
      %p194 = por %p192, %p193
      %p195 = scmp.ne.s32.totalorder %s183, %s184
      %p196 = scmp.eq.s32.totalorder %s28, 1
      %p197 = por %p195, %p196
      %p199 = scmp.ne.s32.totalorder %s184, %s198
      %p200 = scmp.eq.s32.totalorder %s28, 0
      %p201 = por %p199, %p200
      %s203 = sadd.s32 %s202, 1
      %p206 = scmp.eq.s32.totalorder %s22, 1
      %p207 = scmp.ne.s32.totalorder %s202, %s204
      %p208 = scmp.eq.s32.totalorder %s22, 0
      %p209 = por %p207, %p208
      %p210 = scmp.ne.s32.totalorder %s202, %s204
      %p211 = scmp.eq.s32.totalorder %s27, 1
      %p212 = por %p210, %p211
      %p213 = scmp.ne.s32.totalorder %s204, %s205
      %p214 = scmp.eq.s32.totalorder %s27, 0
      %p215 = por %p213, %p214
      %p216 = scmp.ne.s32.totalorder %s204, %s205
      %p217 = scmp.eq.s32.totalorder %s28, 1
      %p218 = por %p216, %p217
      %p220 = scmp.ne.s32.totalorder %s205, %s219
      %p221 = scmp.eq.s32.totalorder %s28, 0
      %p222 = por %p220, %p221
      %s224 = sadd.s32 %s223, 1
      %p227 = scmp.eq.s32.totalorder %s22, 1
      %p228 = scmp.ne.s32.totalorder %s223, %s225
      %p229 = scmp.eq.s32.totalorder %s22, 0
      %p230 = por %p228, %p229
      %p231 = scmp.ne.s32.totalorder %s223, %s225
      %p232 = scmp.eq.s32.totalorder %s27, 1
      %p233 = por %p231, %p232
      %p234 = scmp.ne.s32.totalorder %s225, %s226
      %p235 = scmp.eq.s32.totalorder %s27, 0
      %p236 = por %p234, %p235
      %p237 = scmp.ne.s32.totalorder %s225, %s226
      %p238 = scmp.eq.s32.totalorder %s28, 1
      %p239 = por %p237, %p238
      %p241 = scmp.ne.s32.totalorder %s226, %s240
      %p242 = scmp.eq.s32.totalorder %s28, 0
      %p243 = por %p241, %p242
      %s245 = sadd.s32 %s244, 1
      %p248 = scmp.eq.s32.totalorder %s22, 1
      %p249 = scmp.ne.s32.totalorder %s244, %s246
      %p250 = scmp.eq.s32.totalorder %s22, 0
      %p251 = por %p249, %p250
      %p252 = scmp.ne.s32.totalorder %s244, %s246
      %p253 = scmp.eq.s32.totalorder %s27, 1
      %p254 = por %p252, %p253
      %p255 = scmp.ne.s32.totalorder %s246, %s247
      %p256 = scmp.eq.s32.totalorder %s27, 0
      %p257 = por %p255, %p256
      %p258 = scmp.ne.s32.totalorder %s246, %s247
      %p259 = scmp.eq.s32.totalorder %s28, 1
      %p260 = por %p258, %p259
      %p262 = scmp.ne.s32.totalorder %s247, %s261
      %p263 = scmp.eq.s32.totalorder %s28, 0
      %p264 = por %p262, %p263
      %s266 = sadd.s32 %s265, 1
      %p269 = scmp.eq.s32.totalorder %s22, 1
      %p270 = scmp.ne.s32.totalorder %s265, %s267
      %p271 = scmp.eq.s32.totalorder %s22, 0
      %p272 = por %p270, %p271
      %p273 = scmp.ne.s32.totalorder %s265, %s267
      %p274 = scmp.eq.s32.totalorder %s27, 1
      %p275 = por %p273, %p274
      %p276 = scmp.ne.s32.totalorder %s267, %s268
      %p277 = scmp.eq.s32.totalorder %s27, 0
      %p278 = por %p276, %p277
      %p279 = scmp.ne.s32.totalorder %s267, %s268
      %p280 = scmp.eq.s32.totalorder %s28, 1
      %p281 = por %p279, %p280
      %p283 = scmp.ne.s32.totalorder %s268, %s282
      %p284 = scmp.eq.s32.totalorder %s28, 0
      %p285 = por %p283, %p284
      %s286 = ssub.s32 %s22, %s29
      %p287 = scmp.eq.s32.totalorder %s286, 0
      %s289 = sadd.s32 %s288, 1
      %s290 = scalar_select %p287, %s288, %s289
      %p293 = pneg %p287
      %p294 = scmp.eq.s32.totalorder %s22, 1
      %p295 = por %p293, %p294
      %p296 = scmp.ne.s32.totalorder %s288, %s291
      %p297 = scmp.eq.s32.totalorder %s22, 0
      %p298 = por %p296, %p297
      %p299 = scmp.ne.s32.totalorder %s288, %s291
      %p300 = scmp.eq.s32.totalorder %s27, 1
      %p301 = por %p299, %p300
      %p302 = scmp.ne.s32.totalorder %s291, %s292
      %p303 = scmp.eq.s32.totalorder %s27, 0
      %p304 = por %p302, %p303
      %p305 = scmp.ne.s32.totalorder %s291, %s292
      %p306 = scmp.eq.s32.totalorder %s28, 1
      %p307 = por %p305, %p306
      %p309 = scmp.ne.s32.totalorder %s292, %s308
      %p310 = scmp.eq.s32.totalorder %s28, 0
      %p311 = por %p309, %p310
      %p312 = scmp.le.s32.totalorder 1, %s22
      %p313 = scmp.lt.s32.totalorder %s22, 3
      %p314 = pnand %p312, %p313
      %p315 = pneg %p314
      // Predicated region
      $region9: #{tpu_custom_call.1} parent=5 // pred_check
        _
      $region10: #{tpu_custom_call.1} parent=5 // pred_check_branch
        %317 = sbr.rel (%p314) target = $region12
      $region11: #{tpu_custom_call.1} parent=5 // pred_region
        %s318 = ssub.s32 %s22, 1
        // Predicated region
        $region13: #{tpu_custom_call.1} parent=11 // pred_check
          %p319 = pneg %p173
        $region14: #{tpu_custom_call.1} parent=11 // pred_check_branch
          %321 = sbr.rel (%p319) target = $region16
        $region15: #{tpu_custom_call.1} parent=11 // pred_region
          _
        $region16: #{tpu_custom_call.1} parent=11 // pred_fallthru
          _
        // Predicated region
        $region17: #{tpu_custom_call.1} parent=11 // pred_check
          %p322 = pneg %p194
        $region18: #{tpu_custom_call.1} parent=11 // pred_check_branch
          %324 = sbr.rel (%p322) target = $region20
        $region19: #{tpu_custom_call.1} parent=11 // pred_region
          _
        $region20: #{tpu_custom_call.1} parent=11 // pred_fallthru
          _
        // Predicated region
        $region21: #{tpu_custom_call.1} parent=11 // pred_check
          %p325 = pneg %p215
        $region22: #{tpu_custom_call.1} parent=11 // pred_check_branch
          %327 = sbr.rel (%p325) target = $region24
        $region23: #{tpu_custom_call.1} parent=11 // pred_region
          _
        $region24: #{tpu_custom_call.1} parent=11 // pred_fallthru
          _
        // Predicated region
        $region25: #{tpu_custom_call.1} parent=11 // pred_check
          %p328 = pneg %p236
        $region26: #{tpu_custom_call.1} parent=11 // pred_check_branch
          %330 = sbr.rel (%p328) target = $region28
        $region27: #{tpu_custom_call.1} parent=11 // pred_region
          _
        $region28: #{tpu_custom_call.1} parent=11 // pred_fallthru
          _
        // Predicated region
        $region29: #{tpu_custom_call.1} parent=11 // pred_check
          %p331 = pneg %p257
        $region30: #{tpu_custom_call.1} parent=11 // pred_check_branch
          %333 = sbr.rel (%p331) target = $region32
        $region31: #{tpu_custom_call.1} parent=11 // pred_region
          _
        $region32: #{tpu_custom_call.1} parent=11 // pred_fallthru
          _
        // Predicated region
        $region33: #{tpu_custom_call.1} parent=11 // pred_check
          %p334 = pneg %p278
        $region34: #{tpu_custom_call.1} parent=11 // pred_check_branch
          %336 = sbr.rel (%p334) target = $region36
        $region35: #{tpu_custom_call.1} parent=11 // pred_region
          _
        $region36: #{tpu_custom_call.1} parent=11 // pred_fallthru
          _
      $region12: #{tpu_custom_call.1} parent=5 // pred_fallthru
        _
      %p337 = scmp.lt.s32.totalorder %s22, 2
      // Predicated region
      $region37: #{tpu_custom_call.1} parent=5 // pred_check
        %p338 = pneg %p337
      $region38: #{tpu_custom_call.1} parent=5 // pred_check_branch
        %340 = sbr.rel (%p338) target = $region40
      $region39: #{tpu_custom_call.1} parent=5 // pred_region
        // Predicated region
        $region41: #{tpu_custom_call.1} parent=39 // pred_check
          %p341 = pneg %p42
        $region42: #{tpu_custom_call.1} parent=39 // pred_check_branch
          %343 = sbr.rel (%p341) target = $region44
        $region43: #{tpu_custom_call.1} parent=39 // pred_region
          %s344 = smul.u32 64, %s22
          %p345 = scmp.lt.s32.totalorder %s344, 127
          %s346 = scalar_select %p345, %s344, 127
          %s347 = smul.addr %s346, 4
          %s348 = scalar_lea.vmem %s0, %s347
          %s349 = smul.u32 64, %s22
        $region44: #{tpu_custom_call.1} parent=39 // pred_fallthru
          _
        // Predicated region
        $region45: #{tpu_custom_call.1} parent=39 // pred_check
          %p350 = pneg %p68
        $region46: #{tpu_custom_call.1} parent=39 // pred_check_branch
          %352 = sbr.rel (%p350) target = $region48
        $region47: #{tpu_custom_call.1} parent=39 // pred_region
          %s353 = smul.u32 64, %s22
          %p354 = scmp.lt.s32.totalorder %s353, 127
          %s355 = scalar_select %p354, %s353, 127
          %s356 = smul.addr %s355, 4
          %s357 = scalar_lea.vmem %s1, %s356
          %s358 = smul.u32 64, %s22
        $region48: #{tpu_custom_call.1} parent=39 // pred_fallthru
          _
        // Predicated region
        $region49: #{tpu_custom_call.1} parent=39 // pred_check
          %p359 = pneg %p94
        $region50: #{tpu_custom_call.1} parent=39 // pred_check_branch
          %361 = sbr.rel (%p359) target = $region52
        $region51: #{tpu_custom_call.1} parent=39 // pred_region
          %s362 = smul.u32 64, %s22
          %p363 = scmp.lt.s32.totalorder %s362, 127
          %s364 = scalar_select %p363, %s362, 127
          %s365 = smul.addr %s364, 4
          %s366 = scalar_lea.vmem %s2, %s365
          %s367 = smul.u32 64, %s22
        $region52: #{tpu_custom_call.1} parent=39 // pred_fallthru
          _
        // Predicated region
        $region53: #{tpu_custom_call.1} parent=39 // pred_check
          %p368 = pneg %p120
        $region54: #{tpu_custom_call.1} parent=39 // pred_check_branch
          %370 = sbr.rel (%p368) target = $region56
        $region55: #{tpu_custom_call.1} parent=39 // pred_region
          %s371 = smul.u32 64, %s22
          %p372 = scmp.lt.s32.totalorder %s371, 127
          %s373 = scalar_select %p372, %s371, 127
          %s374 = smul.addr %s373, 4
          %s375 = scalar_lea.vmem %s3, %s374
          %s376 = smul.u32 64, %s22
        $region56: #{tpu_custom_call.1} parent=39 // pred_fallthru
          _
        // Predicated region
        $region57: #{tpu_custom_call.1} parent=39 // pred_check
          %p377 = pneg %p146
        $region58: #{tpu_custom_call.1} parent=39 // pred_check_branch
          %379 = sbr.rel (%p377) target = $region60
        $region59: #{tpu_custom_call.1} parent=39 // pred_region
          %s380 = smul.u32 64, %s22
          %p381 = scmp.lt.s32.totalorder %s380, 127
          %s382 = scalar_select %p381, %s380, 127
          %s383 = smul.addr %s382, 4
          %s384 = scalar_lea.vmem %s4, %s383
          %s385 = smul.u32 64, %s22
        $region60: #{tpu_custom_call.1} parent=39 // pred_fallthru
          _
      $region40: #{tpu_custom_call.1} parent=5 // pred_fallthru
        _
      %p386 = scmp.le.s32.totalorder 1, %s22
      %p387 = scmp.lt.s32.totalorder %s22, 3
      %p388 = pnand %p386, %p387
      %p389 = pneg %p388
      // Predicated region
      $region61: #{tpu_custom_call.1} parent=5 // pred_check
        _
      $region62: #{tpu_custom_call.1} parent=5 // pred_check_branch
        %391 = sbr.rel (%p388) target = $region64
      $region63: #{tpu_custom_call.1} parent=5 // pred_region
        %s392 = ssub.s32 %s22, 1
        %s393 = smul.u32 64, %s27
        %p394 = scmp.lt.s32.totalorder %s393, 127
        %s395 = scalar_select %p394, %s393, 127
        %s396 = smul.addr %s395, 4
        %s397 = scalar_lea.vmem %s0, %s396
        %p398 = pneg %p48
        %p399 = pneg %p45
        %s400 = smul.u32 64, %s27
        %p401 = scmp.lt.s32.totalorder %s400, 127
        %s402 = scalar_select %p401, %s400, 127
        %s403 = smul.addr %s402, 4
        %s404 = scalar_lea.vmem %s1, %s403
        %p405 = pneg %p74
        %p406 = pneg %p71
        %s407 = smul.u32 64, %s27
        %p408 = scmp.lt.s32.totalorder %s407, 127
        %s409 = scalar_select %p408, %s407, 127
        %s410 = smul.addr %s409, 4
        %s411 = scalar_lea.vmem %s2, %s410
        %p412 = pneg %p100
        %p413 = pneg %p97
        %s414 = smul.u32 64, %s27
        %p415 = scmp.lt.s32.totalorder %s414, 127
        %s416 = scalar_select %p415, %s414, 127
        %s417 = smul.addr %s416, 4
        %s418 = scalar_lea.vmem %s3, %s417
        %p419 = pneg %p126
        %p420 = pneg %p123
        %s421 = smul.u32 64, %s27
        %p422 = scmp.lt.s32.totalorder %s421, 127
        %s423 = scalar_select %p422, %s421, 127
        %s424 = smul.addr %s423, 4
        %s425 = scalar_lea.vmem %s4, %s424
        %p426 = pneg %p152
        %p427 = pneg %p149
        %p428 = pneg %p173
        %p429 = pneg %p170
        %p430 = pneg %p194
        %p431 = pneg %p191
        %p432 = pneg %p215
        %p433 = pneg %p212
        %p434 = pneg %p236
        %p435 = pneg %p233
        %p436 = pneg %p257
        %p437 = pneg %p254
        %p438 = pneg %p278
        %p439 = pneg %p275
        %p440 = pneg %p304
        %p441 = pneg %p301
        %s442 = sand.u32 %s291, 1
        %s443 = scalar_lea.sflag [#allocation4], %s442
        %s444 = sand.u32 %s291, 1
        %s445 = smul.addr %s444, 4
        %s446 = scalar_lea.vmem [#allocation3], %s445
        %s447 = smul.u32 64, %s27
        %p448 = scmp.lt.s32.totalorder %s447, 127
        %s449 = scalar_select %p448, %s447, 127
        %s450 = smul.addr %s449, 4
        %s451 = scalar_lea.vmem %s0, %s450
        %s452 = smul.u32 64, %s27
        %s453 = smul.u32 64, %s27
        %p454 = scmp.lt.s32.totalorder %s453, 127
        %s455 = scalar_select %p454, %s453, 127
        %s456 = smul.addr %s455, 4
        %s457 = scalar_lea.vmem %s1, %s456
        %s458 = smul.u32 64, %s27
        %s459 = smul.u32 64, %s27
        %p460 = scmp.lt.s32.totalorder %s459, 127
        %s461 = scalar_select %p460, %s459, 127
        %s462 = smul.addr %s461, 4
        %s463 = scalar_lea.vmem %s2, %s462
        %s464 = smul.u32 64, %s27
        %s465 = smul.u32 64, %s27
        %p466 = scmp.lt.s32.totalorder %s465, 127
        %s467 = scalar_select %p466, %s465, 127
        %s468 = smul.addr %s467, 4
        %s469 = scalar_lea.vmem %s3, %s468
        %s470 = smul.u32 64, %s27
        %s471 = smul.u32 64, %s27
        %p472 = scmp.lt.s32.totalorder %s471, 127
        %s473 = scalar_select %p472, %s471, 127
        %s474 = smul.addr %s473, 4
        %s475 = scalar_lea.vmem %s4, %s474
        %s476 = smul.u32 64, %s27
        %s477 = smul.u32 4, %s27
        %v479 = vld [vmem:[%s451] sm:$0xf]
        %v480 = vld [vmem:[%s451 + $0x4] sm:$0xf]
        %v481 = vld [vmem:[%s451 + $0x8] sm:$0xf]
        %v482 = vld [vmem:[%s451 + $0xc] sm:$0xf]
        %v483 = vld [vmem:[%s451 + $0x10] sm:$0xf]
        %v484 = vld [vmem:[%s451 + $0x14] sm:$0xf]
        %v485 = vld [vmem:[%s451 + $0x18] sm:$0xf]
        %v486 = vld [vmem:[%s451 + $0x1c] sm:$0xf]
        %v487 = vld [vmem:[%s451 + $0x20] sm:$0xf]
        %v488 = vld [vmem:[%s451 + $0x24] sm:$0xf]
        %v489 = vld [vmem:[%s451 + $0x28] sm:$0xf]
        %v490 = vld [vmem:[%s451 + $0x2c] sm:$0xf]
        %v491 = vld [vmem:[%s451 + $0x30] sm:$0xf]
        %v492 = vld [vmem:[%s451 + $0x34] sm:$0xf]
        %v493 = vld [vmem:[%s451 + $0x38] sm:$0xf]
        %v494 = vld [vmem:[%s451 + $0x3c] sm:$0xf]
        %v495 = vld [vmem:[%s451 + $0x40] sm:$0xf]
        %v496 = vld [vmem:[%s451 + $0x44] sm:$0xf]
        %v497 = vld [vmem:[%s451 + $0x48] sm:$0xf]
        %v498 = vld [vmem:[%s451 + $0x4c] sm:$0xf]
        %v499 = vld [vmem:[%s451 + $0x50] sm:$0xf]
        %v500 = vld [vmem:[%s451 + $0x54] sm:$0xf]
        %v501 = vld [vmem:[%s451 + $0x58] sm:$0xf]
        %v502 = vld [vmem:[%s451 + $0x5c] sm:$0xf]
        %v503 = vld [vmem:[%s451 + $0x60] sm:$0xf]
        %v504 = vld [vmem:[%s451 + $0x64] sm:$0xf]
        %v505 = vld [vmem:[%s451 + $0x68] sm:$0xf]
        %v506 = vld [vmem:[%s451 + $0x6c] sm:$0xf]
        %v507 = vld [vmem:[%s451 + $0x70] sm:$0xf]
        %v508 = vld [vmem:[%s451 + $0x74] sm:$0xf]
        %v509 = vld [vmem:[%s451 + $0x78] sm:$0xf]
        %v510 = vld [vmem:[%s451 + $0x7c] sm:$0xf]
        %v511 = vld [vmem:[%s451 + $0x80] sm:$0xf]
        %v512 = vld [vmem:[%s451 + $0x84] sm:$0xf]
        %v513 = vld [vmem:[%s451 + $0x88] sm:$0xf]
        %v514 = vld [vmem:[%s451 + $0x8c] sm:$0xf]
        %v515 = vld [vmem:[%s451 + $0x90] sm:$0xf]
        %v516 = vld [vmem:[%s451 + $0x94] sm:$0xf]
        %v517 = vld [vmem:[%s451 + $0x98] sm:$0xf]
        %v518 = vld [vmem:[%s451 + $0x9c] sm:$0xf]
        %v519 = vld [vmem:[%s451 + $0xa0] sm:$0xf]
        %v520 = vld [vmem:[%s451 + $0xa4] sm:$0xf]
        %v521 = vld [vmem:[%s451 + $0xa8] sm:$0xf]
        %v522 = vld [vmem:[%s451 + $0xac] sm:$0xf]
        %v523 = vld [vmem:[%s451 + $0xb0] sm:$0xf]
        %v524 = vld [vmem:[%s451 + $0xb4] sm:$0xf]
        %v525 = vld [vmem:[%s451 + $0xb8] sm:$0xf]
        %v526 = vld [vmem:[%s451 + $0xbc] sm:$0xf]
        %v527 = vld [vmem:[%s451 + $0xc0] sm:$0xf]
        %v528 = vld [vmem:[%s451 + $0xc4] sm:$0xf]
        %v529 = vld [vmem:[%s451 + $0xc8] sm:$0xf]
        %v530 = vld [vmem:[%s451 + $0xcc] sm:$0xf]
        %v531 = vld [vmem:[%s451 + $0xd0] sm:$0xf]
        %v532 = vld [vmem:[%s451 + $0xd4] sm:$0xf]
        %v533 = vld [vmem:[%s451 + $0xd8] sm:$0xf]
        %v534 = vld [vmem:[%s451 + $0xdc] sm:$0xf]
        %v535 = vld [vmem:[%s451 + $0xe0] sm:$0xf]
        %v536 = vld [vmem:[%s451 + $0xe4] sm:$0xf]
        %v537 = vld [vmem:[%s451 + $0xe8] sm:$0xf]
        %v538 = vld [vmem:[%s451 + $0xec] sm:$0xf]
        %v539 = vld [vmem:[%s451 + $0xf0] sm:$0xf]
        %v540 = vld [vmem:[%s451 + $0xf4] sm:$0xf]
        %v541 = vld [vmem:[%s451 + $0xf8] sm:$0xf]
        %v542 = vld [vmem:[%s451 + $0xfc] sm:$0xf]
        %v543 = vld [vmem:[%s457] sm:$0xf]
        %v544 = vld [vmem:[%s457 + $0x4] sm:$0xf]
        %v545 = vld [vmem:[%s457 + $0x8] sm:$0xf]
        %v546 = vld [vmem:[%s457 + $0xc] sm:$0xf]
        %v547 = vld [vmem:[%s457 + $0x10] sm:$0xf]
        %v548 = vld [vmem:[%s457 + $0x14] sm:$0xf]
        %v549 = vld [vmem:[%s457 + $0x18] sm:$0xf]
        %v550 = vld [vmem:[%s457 + $0x1c] sm:$0xf]
        %v551 = vld [vmem:[%s457 + $0x20] sm:$0xf]
        %v552 = vld [vmem:[%s457 + $0x24] sm:$0xf]
        %v553 = vld [vmem:[%s457 + $0x28] sm:$0xf]
        %v554 = vld [vmem:[%s457 + $0x2c] sm:$0xf]
        %v555 = vld [vmem:[%s457 + $0x30] sm:$0xf]
        %v556 = vld [vmem:[%s457 + $0x34] sm:$0xf]
        %v557 = vld [vmem:[%s457 + $0x38] sm:$0xf]
        %v558 = vld [vmem:[%s457 + $0x3c] sm:$0xf]
        %v559 = vld [vmem:[%s457 + $0x40] sm:$0xf]
        %v560 = vld [vmem:[%s457 + $0x44] sm:$0xf]
        %v561 = vld [vmem:[%s457 + $0x48] sm:$0xf]
        %v562 = vld [vmem:[%s457 + $0x4c] sm:$0xf]
        %v563 = vld [vmem:[%s457 + $0x50] sm:$0xf]
        %v564 = vld [vmem:[%s457 + $0x54] sm:$0xf]
        %v565 = vld [vmem:[%s457 + $0x58] sm:$0xf]
        %v566 = vld [vmem:[%s457 + $0x5c] sm:$0xf]
        %v567 = vld [vmem:[%s457 + $0x60] sm:$0xf]
        %v568 = vld [vmem:[%s457 + $0x64] sm:$0xf]
        %v569 = vld [vmem:[%s457 + $0x68] sm:$0xf]
        %v570 = vld [vmem:[%s457 + $0x6c] sm:$0xf]
        %v571 = vld [vmem:[%s457 + $0x70] sm:$0xf]
        %v572 = vld [vmem:[%s457 + $0x74] sm:$0xf]
        %v573 = vld [vmem:[%s457 + $0x78] sm:$0xf]
        %v574 = vld [vmem:[%s457 + $0x7c] sm:$0xf]
        %v575 = vld [vmem:[%s457 + $0x80] sm:$0xf]
        %v576 = vld [vmem:[%s457 + $0x84] sm:$0xf]
        %v577 = vld [vmem:[%s457 + $0x88] sm:$0xf]
        %v578 = vld [vmem:[%s457 + $0x8c] sm:$0xf]
        %v579 = vld [vmem:[%s457 + $0x90] sm:$0xf]
        %v580 = vld [vmem:[%s457 + $0x94] sm:$0xf]
        %v581 = vld [vmem:[%s457 + $0x98] sm:$0xf]
        %v582 = vld [vmem:[%s457 + $0x9c] sm:$0xf]
        %v583 = vld [vmem:[%s457 + $0xa0] sm:$0xf]
        %v584 = vld [vmem:[%s457 + $0xa4] sm:$0xf]
        %v585 = vld [vmem:[%s457 + $0xa8] sm:$0xf]
        %v586 = vld [vmem:[%s457 + $0xac] sm:$0xf]
        %v587 = vld [vmem:[%s457 + $0xb0] sm:$0xf]
        %v588 = vld [vmem:[%s457 + $0xb4] sm:$0xf]
        %v589 = vld [vmem:[%s457 + $0xb8] sm:$0xf]
        %v590 = vld [vmem:[%s457 + $0xbc] sm:$0xf]
        %v591 = vld [vmem:[%s457 + $0xc0] sm:$0xf]
        %v592 = vld [vmem:[%s457 + $0xc4] sm:$0xf]
        %v593 = vld [vmem:[%s457 + $0xc8] sm:$0xf]
        %v594 = vld [vmem:[%s457 + $0xcc] sm:$0xf]
        %v595 = vld [vmem:[%s457 + $0xd0] sm:$0xf]
        %v596 = vld [vmem:[%s457 + $0xd4] sm:$0xf]
        %v597 = vld [vmem:[%s457 + $0xd8] sm:$0xf]
        %v598 = vld [vmem:[%s457 + $0xdc] sm:$0xf]
        %v599 = vld [vmem:[%s457 + $0xe0] sm:$0xf]
        %v600 = vld [vmem:[%s457 + $0xe4] sm:$0xf]
        %v601 = vld [vmem:[%s457 + $0xe8] sm:$0xf]
        %v602 = vld [vmem:[%s457 + $0xec] sm:$0xf]
        %v603 = vld [vmem:[%s457 + $0xf0] sm:$0xf]
        %v604 = vld [vmem:[%s457 + $0xf4] sm:$0xf]
        %v605 = vld [vmem:[%s457 + $0xf8] sm:$0xf]
        %v606 = vld [vmem:[%s457 + $0xfc] sm:$0xf]
        %v607 = vld [vmem:[%s463] sm:$0xf]
        %v608 = vld [vmem:[%s463 + $0x4] sm:$0xf]
        %v609 = vld [vmem:[%s463 + $0x8] sm:$0xf]
        %v610 = vld [vmem:[%s463 + $0xc] sm:$0xf]
        %v611 = vld [vmem:[%s463 + $0x10] sm:$0xf]
        %v612 = vld [vmem:[%s463 + $0x14] sm:$0xf]
        %v613 = vld [vmem:[%s463 + $0x18] sm:$0xf]
        %v614 = vld [vmem:[%s463 + $0x1c] sm:$0xf]
        %v615 = vld [vmem:[%s463 + $0x20] sm:$0xf]
        %v616 = vld [vmem:[%s463 + $0x24] sm:$0xf]
        %v617 = vld [vmem:[%s463 + $0x28] sm:$0xf]
        %v618 = vld [vmem:[%s463 + $0x2c] sm:$0xf]
        %v619 = vld [vmem:[%s463 + $0x30] sm:$0xf]
        %v620 = vld [vmem:[%s463 + $0x34] sm:$0xf]
        %v621 = vld [vmem:[%s463 + $0x38] sm:$0xf]
        %v622 = vld [vmem:[%s463 + $0x3c] sm:$0xf]
        %v623 = vld [vmem:[%s463 + $0x40] sm:$0xf]
        %v624 = vld [vmem:[%s463 + $0x44] sm:$0xf]
        %v625 = vld [vmem:[%s463 + $0x48] sm:$0xf]
        %v626 = vld [vmem:[%s463 + $0x4c] sm:$0xf]
        %v627 = vld [vmem:[%s463 + $0x50] sm:$0xf]
        %v628 = vld [vmem:[%s463 + $0x54] sm:$0xf]
        %v629 = vld [vmem:[%s463 + $0x58] sm:$0xf]
        %v630 = vld [vmem:[%s463 + $0x5c] sm:$0xf]
        %v631 = vld [vmem:[%s463 + $0x60] sm:$0xf]
        %v632 = vld [vmem:[%s463 + $0x64] sm:$0xf]
        %v633 = vld [vmem:[%s463 + $0x68] sm:$0xf]
        %v634 = vld [vmem:[%s463 + $0x6c] sm:$0xf]
        %v635 = vld [vmem:[%s463 + $0x70] sm:$0xf]
        %v636 = vld [vmem:[%s463 + $0x74] sm:$0xf]
        %v637 = vld [vmem:[%s463 + $0x78] sm:$0xf]
        %v638 = vld [vmem:[%s463 + $0x7c] sm:$0xf]
        %v639 = vld [vmem:[%s463 + $0x80] sm:$0xf]
        %v640 = vld [vmem:[%s463 + $0x84] sm:$0xf]
        %v641 = vld [vmem:[%s463 + $0x88] sm:$0xf]
        %v642 = vld [vmem:[%s463 + $0x8c] sm:$0xf]
        %v643 = vld [vmem:[%s463 + $0x90] sm:$0xf]
        %v644 = vld [vmem:[%s463 + $0x94] sm:$0xf]
        %v645 = vld [vmem:[%s463 + $0x98] sm:$0xf]
        %v646 = vld [vmem:[%s463 + $0x9c] sm:$0xf]
        %v647 = vld [vmem:[%s463 + $0xa0] sm:$0xf]
        %v648 = vld [vmem:[%s463 + $0xa4] sm:$0xf]
        %v649 = vld [vmem:[%s463 + $0xa8] sm:$0xf]
        %v650 = vld [vmem:[%s463 + $0xac] sm:$0xf]
        %v651 = vld [vmem:[%s463 + $0xb0] sm:$0xf]
        %v652 = vld [vmem:[%s463 + $0xb4] sm:$0xf]
        %v653 = vld [vmem:[%s463 + $0xb8] sm:$0xf]
        %v654 = vld [vmem:[%s463 + $0xbc] sm:$0xf]
        %v655 = vld [vmem:[%s463 + $0xc0] sm:$0xf]
        %v656 = vld [vmem:[%s463 + $0xc4] sm:$0xf]
        %v657 = vld [vmem:[%s463 + $0xc8] sm:$0xf]
        %v658 = vld [vmem:[%s463 + $0xcc] sm:$0xf]
        %v659 = vld [vmem:[%s463 + $0xd0] sm:$0xf]
        %v660 = vld [vmem:[%s463 + $0xd4] sm:$0xf]
        %v661 = vld [vmem:[%s463 + $0xd8] sm:$0xf]
        %v662 = vld [vmem:[%s463 + $0xdc] sm:$0xf]
        %v663 = vld [vmem:[%s463 + $0xe0] sm:$0xf]
        %v664 = vld [vmem:[%s463 + $0xe4] sm:$0xf]
        %v665 = vld [vmem:[%s463 + $0xe8] sm:$0xf]
        %v666 = vld [vmem:[%s463 + $0xec] sm:$0xf]
        %v667 = vld [vmem:[%s463 + $0xf0] sm:$0xf]
        %v668 = vld [vmem:[%s463 + $0xf4] sm:$0xf]
        %v669 = vld [vmem:[%s463 + $0xf8] sm:$0xf]
        %v670 = vld [vmem:[%s463 + $0xfc] sm:$0xf]
        %v671 = vld [vmem:[%s469] sm:$0xf]
        %v672 = vld [vmem:[%s469 + $0x4] sm:$0xf]
        %v673 = vld [vmem:[%s469 + $0x8] sm:$0xf]
        %v674 = vld [vmem:[%s469 + $0xc] sm:$0xf]
        %v675 = vld [vmem:[%s469 + $0x10] sm:$0xf]
        %v676 = vld [vmem:[%s469 + $0x14] sm:$0xf]
        %v677 = vld [vmem:[%s469 + $0x18] sm:$0xf]
        %v678 = vld [vmem:[%s469 + $0x1c] sm:$0xf]
        %v679 = vld [vmem:[%s469 + $0x20] sm:$0xf]
        %v680 = vld [vmem:[%s469 + $0x24] sm:$0xf]
        %v681 = vld [vmem:[%s469 + $0x28] sm:$0xf]
        %v682 = vld [vmem:[%s469 + $0x2c] sm:$0xf]
        %v683 = vld [vmem:[%s469 + $0x30] sm:$0xf]
        %v684 = vld [vmem:[%s469 + $0x34] sm:$0xf]
        %v685 = vld [vmem:[%s469 + $0x38] sm:$0xf]
        %v686 = vld [vmem:[%s469 + $0x3c] sm:$0xf]
        %v687 = vld [vmem:[%s469 + $0x40] sm:$0xf]
        %v688 = vld [vmem:[%s469 + $0x44] sm:$0xf]
        %v689 = vld [vmem:[%s469 + $0x48] sm:$0xf]
        %v690 = vld [vmem:[%s469 + $0x4c] sm:$0xf]
        %v691 = vld [vmem:[%s469 + $0x50] sm:$0xf]
        %v692 = vld [vmem:[%s469 + $0x54] sm:$0xf]
        %v693 = vld [vmem:[%s469 + $0x58] sm:$0xf]
        %v694 = vld [vmem:[%s469 + $0x5c] sm:$0xf]
        %v695 = vld [vmem:[%s469 + $0x60] sm:$0xf]
        %v696 = vld [vmem:[%s469 + $0x64] sm:$0xf]
        %v697 = vld [vmem:[%s469 + $0x68] sm:$0xf]
        %v698 = vld [vmem:[%s469 + $0x6c] sm:$0xf]
        %v699 = vld [vmem:[%s469 + $0x70] sm:$0xf]
        %v700 = vld [vmem:[%s469 + $0x74] sm:$0xf]
        %v701 = vld [vmem:[%s469 + $0x78] sm:$0xf]
        %v702 = vld [vmem:[%s469 + $0x7c] sm:$0xf]
        %v703 = vld [vmem:[%s469 + $0x80] sm:$0xf]
        %v704 = vld [vmem:[%s469 + $0x84] sm:$0xf]
        %v705 = vld [vmem:[%s469 + $0x88] sm:$0xf]
        %v706 = vld [vmem:[%s469 + $0x8c] sm:$0xf]
        %v707 = vld [vmem:[%s469 + $0x90] sm:$0xf]
        %v708 = vld [vmem:[%s469 + $0x94] sm:$0xf]
        %v709 = vld [vmem:[%s469 + $0x98] sm:$0xf]
        %v710 = vld [vmem:[%s469 + $0x9c] sm:$0xf]
        %v711 = vld [vmem:[%s469 + $0xa0] sm:$0xf]
        %v712 = vld [vmem:[%s469 + $0xa4] sm:$0xf]
        %v713 = vld [vmem:[%s469 + $0xa8] sm:$0xf]
        %v714 = vld [vmem:[%s469 + $0xac] sm:$0xf]
        %v715 = vld [vmem:[%s469 + $0xb0] sm:$0xf]
        %v716 = vld [vmem:[%s469 + $0xb4] sm:$0xf]
        %v717 = vld [vmem:[%s469 + $0xb8] sm:$0xf]
        %v718 = vld [vmem:[%s469 + $0xbc] sm:$0xf]
        %v719 = vld [vmem:[%s469 + $0xc0] sm:$0xf]
        %v720 = vld [vmem:[%s469 + $0xc4] sm:$0xf]
        %v721 = vld [vmem:[%s469 + $0xc8] sm:$0xf]
        %v722 = vld [vmem:[%s469 + $0xcc] sm:$0xf]
        %v723 = vld [vmem:[%s469 + $0xd0] sm:$0xf]
        %v724 = vld [vmem:[%s469 + $0xd4] sm:$0xf]
        %v725 = vld [vmem:[%s469 + $0xd8] sm:$0xf]
        %v726 = vld [vmem:[%s469 + $0xdc] sm:$0xf]
        %v727 = vld [vmem:[%s469 + $0xe0] sm:$0xf]
        %v728 = vld [vmem:[%s469 + $0xe4] sm:$0xf]
        %v729 = vld [vmem:[%s469 + $0xe8] sm:$0xf]
        %v730 = vld [vmem:[%s469 + $0xec] sm:$0xf]
        %v731 = vld [vmem:[%s469 + $0xf0] sm:$0xf]
        %v732 = vld [vmem:[%s469 + $0xf4] sm:$0xf]
        %v733 = vld [vmem:[%s469 + $0xf8] sm:$0xf]
        %v734 = vld [vmem:[%s469 + $0xfc] sm:$0xf]
        %v735 = vld [vmem:[%s475] sm:$0xf]
        %v736 = vld [vmem:[%s475 + $0x4] sm:$0xf]
        %v737 = vld [vmem:[%s475 + $0x8] sm:$0xf]
        %v738 = vld [vmem:[%s475 + $0xc] sm:$0xf]
        %v739 = vld [vmem:[%s475 + $0x10] sm:$0xf]
        %v740 = vld [vmem:[%s475 + $0x14] sm:$0xf]
        %v741 = vld [vmem:[%s475 + $0x18] sm:$0xf]
        %v742 = vld [vmem:[%s475 + $0x1c] sm:$0xf]
        %v743 = vld [vmem:[%s475 + $0x20] sm:$0xf]
        %v744 = vld [vmem:[%s475 + $0x24] sm:$0xf]
        %v745 = vld [vmem:[%s475 + $0x28] sm:$0xf]
        %v746 = vld [vmem:[%s475 + $0x2c] sm:$0xf]
        %v747 = vld [vmem:[%s475 + $0x30] sm:$0xf]
        %v748 = vld [vmem:[%s475 + $0x34] sm:$0xf]
        %v749 = vld [vmem:[%s475 + $0x38] sm:$0xf]
        %v750 = vld [vmem:[%s475 + $0x3c] sm:$0xf]
        %v751 = vld [vmem:[%s475 + $0x40] sm:$0xf]
        %v752 = vld [vmem:[%s475 + $0x44] sm:$0xf]
        %v753 = vld [vmem:[%s475 + $0x48] sm:$0xf]
        %v754 = vld [vmem:[%s475 + $0x4c] sm:$0xf]
        %v755 = vld [vmem:[%s475 + $0x50] sm:$0xf]
        %v756 = vld [vmem:[%s475 + $0x54] sm:$0xf]
        %v757 = vld [vmem:[%s475 + $0x58] sm:$0xf]
        %v758 = vld [vmem:[%s475 + $0x5c] sm:$0xf]
        %v759 = vld [vmem:[%s475 + $0x60] sm:$0xf]
        %v760 = vld [vmem:[%s475 + $0x64] sm:$0xf]
        %v761 = vld [vmem:[%s475 + $0x68] sm:$0xf]
        %v762 = vld [vmem:[%s475 + $0x6c] sm:$0xf]
        %v763 = vld [vmem:[%s475 + $0x70] sm:$0xf]
        %v764 = vld [vmem:[%s475 + $0x74] sm:$0xf]
        %v765 = vld [vmem:[%s475 + $0x78] sm:$0xf]
        %v766 = vld [vmem:[%s475 + $0x7c] sm:$0xf]
        %v767 = vld [vmem:[%s475 + $0x80] sm:$0xf]
        %v768 = vld [vmem:[%s475 + $0x84] sm:$0xf]
        %v769 = vld [vmem:[%s475 + $0x88] sm:$0xf]
        %v770 = vld [vmem:[%s475 + $0x8c] sm:$0xf]
        %v771 = vld [vmem:[%s475 + $0x90] sm:$0xf]
        %v772 = vld [vmem:[%s475 + $0x94] sm:$0xf]
        %v773 = vld [vmem:[%s475 + $0x98] sm:$0xf]
        %v774 = vld [vmem:[%s475 + $0x9c] sm:$0xf]
        %v775 = vld [vmem:[%s475 + $0xa0] sm:$0xf]
        %v776 = vld [vmem:[%s475 + $0xa4] sm:$0xf]
        %v777 = vld [vmem:[%s475 + $0xa8] sm:$0xf]
        %v778 = vld [vmem:[%s475 + $0xac] sm:$0xf]
        %v779 = vld [vmem:[%s475 + $0xb0] sm:$0xf]
        %v780 = vld [vmem:[%s475 + $0xb4] sm:$0xf]
        %v781 = vld [vmem:[%s475 + $0xb8] sm:$0xf]
        %v782 = vld [vmem:[%s475 + $0xbc] sm:$0xf]
        %v783 = vld [vmem:[%s475 + $0xc0] sm:$0xf]
        %v784 = vld [vmem:[%s475 + $0xc4] sm:$0xf]
        %v785 = vld [vmem:[%s475 + $0xc8] sm:$0xf]
        %v786 = vld [vmem:[%s475 + $0xcc] sm:$0xf]
        %v787 = vld [vmem:[%s475 + $0xd0] sm:$0xf]
        %v788 = vld [vmem:[%s475 + $0xd4] sm:$0xf]
        %v789 = vld [vmem:[%s475 + $0xd8] sm:$0xf]
        %v790 = vld [vmem:[%s475 + $0xdc] sm:$0xf]
        %v791 = vld [vmem:[%s475 + $0xe0] sm:$0xf]
        %v792 = vld [vmem:[%s475 + $0xe4] sm:$0xf]
        %v793 = vld [vmem:[%s475 + $0xe8] sm:$0xf]
        %v794 = vld [vmem:[%s475 + $0xec] sm:$0xf]
        %v795 = vld [vmem:[%s475 + $0xf0] sm:$0xf]
        %v796 = vld [vmem:[%s475 + $0xf4] sm:$0xf]
        %v797 = vld [vmem:[%s475 + $0xf8] sm:$0xf]
        %v798 = vld [vmem:[%s475 + $0xfc] sm:$0xf]
        %v863 = vunpack.c.l.b16 %v479
        %v864 = vunpack.c.l.b16 %v480
        %v865 = vunpack.c.l.b16 %v481
        %v866 = vunpack.c.l.b16 %v482
        %v867 = vunpack.c.l.b16 %v483
        %v868 = vunpack.c.l.b16 %v484
        %v869 = vunpack.c.l.b16 %v485
        %v870 = vunpack.c.l.b16 %v486
        %v871 = vunpack.c.l.b16 %v487
        %v872 = vunpack.c.l.b16 %v488
        %v873 = vunpack.c.l.b16 %v489
        %v874 = vunpack.c.l.b16 %v490
        %v875 = vunpack.c.l.b16 %v491
        %v876 = vunpack.c.l.b16 %v492
        %v877 = vunpack.c.l.b16 %v493
        %v878 = vunpack.c.l.b16 %v494
        %v879 = vunpack.c.l.b16 %v495
        %v880 = vunpack.c.l.b16 %v496
        %v881 = vunpack.c.l.b16 %v497
        %v882 = vunpack.c.l.b16 %v498
        %v883 = vunpack.c.l.b16 %v499
        %v884 = vunpack.c.l.b16 %v500
        %v885 = vunpack.c.l.b16 %v501
        %v886 = vunpack.c.l.b16 %v502
        %v887 = vunpack.c.l.b16 %v503
        %v888 = vunpack.c.l.b16 %v504
        %v889 = vunpack.c.l.b16 %v505
        %v890 = vunpack.c.l.b16 %v506
        %v891 = vunpack.c.l.b16 %v507
        %v892 = vunpack.c.l.b16 %v508
        %v893 = vunpack.c.l.b16 %v509
        %v894 = vunpack.c.l.b16 %v510
        %v895 = vunpack.c.l.b16 %v511
        %v896 = vunpack.c.l.b16 %v512
        %v897 = vunpack.c.l.b16 %v513
        %v898 = vunpack.c.l.b16 %v514
        %v899 = vunpack.c.l.b16 %v515
        %v900 = vunpack.c.l.b16 %v516
        %v901 = vunpack.c.l.b16 %v517
        %v902 = vunpack.c.l.b16 %v518
        %v903 = vunpack.c.l.b16 %v519
        %v904 = vunpack.c.l.b16 %v520
        %v905 = vunpack.c.l.b16 %v521
        %v906 = vunpack.c.l.b16 %v522
        %v907 = vunpack.c.l.b16 %v523
        %v908 = vunpack.c.l.b16 %v524
        %v909 = vunpack.c.l.b16 %v525
        %v910 = vunpack.c.l.b16 %v526
        %v911 = vunpack.c.l.b16 %v527
        %v912 = vunpack.c.l.b16 %v528
        %v913 = vunpack.c.l.b16 %v529
        %v914 = vunpack.c.l.b16 %v530
        %v915 = vunpack.c.l.b16 %v531
        %v916 = vunpack.c.l.b16 %v532
        %v917 = vunpack.c.l.b16 %v533
        %v918 = vunpack.c.l.b16 %v534
        %v919 = vunpack.c.l.b16 %v535
        %v920 = vunpack.c.l.b16 %v536
        %v921 = vunpack.c.l.b16 %v537
        %v922 = vunpack.c.l.b16 %v538
        %v923 = vunpack.c.l.b16 %v539
        %v924 = vunpack.c.l.b16 %v540
        %v925 = vunpack.c.l.b16 %v541
        %v926 = vunpack.c.l.b16 %v542
        %v927 = vpack.c.b16 %v864, %v863
        %v928 = vpack.c.b16 %v866, %v865
        %v929 = vpack.c.b16 %v868, %v867
        %v930 = vpack.c.b16 %v870, %v869
        %v931 = vpack.c.b16 %v872, %v871
        %v932 = vpack.c.b16 %v874, %v873
        %v933 = vpack.c.b16 %v876, %v875
        %v934 = vpack.c.b16 %v878, %v877
        %v935 = vpack.c.b16 %v880, %v879
        %v936 = vpack.c.b16 %v882, %v881
        %v937 = vpack.c.b16 %v884, %v883
        %v938 = vpack.c.b16 %v886, %v885
        %v939 = vpack.c.b16 %v888, %v887
        %v940 = vpack.c.b16 %v890, %v889
        %v941 = vpack.c.b16 %v892, %v891
        %v942 = vpack.c.b16 %v894, %v893
        %v943 = vpack.c.b16 %v896, %v895
        %v944 = vpack.c.b16 %v898, %v897
        %v945 = vpack.c.b16 %v900, %v899
        %v946 = vpack.c.b16 %v902, %v901
        %v947 = vpack.c.b16 %v904, %v903
        %v948 = vpack.c.b16 %v906, %v905
        %v949 = vpack.c.b16 %v908, %v907
        %v950 = vpack.c.b16 %v910, %v909
        %v951 = vpack.c.b16 %v912, %v911
        %v952 = vpack.c.b16 %v914, %v913
        %v953 = vpack.c.b16 %v916, %v915
        %v954 = vpack.c.b16 %v918, %v917
        %v955 = vpack.c.b16 %v920, %v919
        %v956 = vpack.c.b16 %v922, %v921
        %v957 = vpack.c.b16 %v924, %v923
        %v958 = vpack.c.b16 %v926, %v925
        %v1023 = vunpack.c.l.b16 %v543
        %v1024 = vunpack.c.l.b16 %v544
        %v1025 = vunpack.c.l.b16 %v545
        %v1026 = vunpack.c.l.b16 %v546
        %v1027 = vunpack.c.l.b16 %v547
        %v1028 = vunpack.c.l.b16 %v548
        %v1029 = vunpack.c.l.b16 %v549
        %v1030 = vunpack.c.l.b16 %v550
        %v1031 = vunpack.c.l.b16 %v551
        %v1032 = vunpack.c.l.b16 %v552
        %v1033 = vunpack.c.l.b16 %v553
        %v1034 = vunpack.c.l.b16 %v554
        %v1035 = vunpack.c.l.b16 %v555
        %v1036 = vunpack.c.l.b16 %v556
        %v1037 = vunpack.c.l.b16 %v557
        %v1038 = vunpack.c.l.b16 %v558
        %v1039 = vunpack.c.l.b16 %v559
        %v1040 = vunpack.c.l.b16 %v560
        %v1041 = vunpack.c.l.b16 %v561
        %v1042 = vunpack.c.l.b16 %v562
        %v1043 = vunpack.c.l.b16 %v563
        %v1044 = vunpack.c.l.b16 %v564
        %v1045 = vunpack.c.l.b16 %v565
        %v1046 = vunpack.c.l.b16 %v566
        %v1047 = vunpack.c.l.b16 %v567
        %v1048 = vunpack.c.l.b16 %v568
        %v1049 = vunpack.c.l.b16 %v569
        %v1050 = vunpack.c.l.b16 %v570
        %v1051 = vunpack.c.l.b16 %v571
        %v1052 = vunpack.c.l.b16 %v572
        %v1053 = vunpack.c.l.b16 %v573
        %v1054 = vunpack.c.l.b16 %v574
        %v1055 = vunpack.c.l.b16 %v575
        %v1056 = vunpack.c.l.b16 %v576
        %v1057 = vunpack.c.l.b16 %v577
        %v1058 = vunpack.c.l.b16 %v578
        %v1059 = vunpack.c.l.b16 %v579
        %v1060 = vunpack.c.l.b16 %v580
        %v1061 = vunpack.c.l.b16 %v581
        %v1062 = vunpack.c.l.b16 %v582
        %v1063 = vunpack.c.l.b16 %v583
        %v1064 = vunpack.c.l.b16 %v584
        %v1065 = vunpack.c.l.b16 %v585
        %v1066 = vunpack.c.l.b16 %v586
        %v1067 = vunpack.c.l.b16 %v587
        %v1068 = vunpack.c.l.b16 %v588
        %v1069 = vunpack.c.l.b16 %v589
        %v1070 = vunpack.c.l.b16 %v590
        %v1071 = vunpack.c.l.b16 %v591
        %v1072 = vunpack.c.l.b16 %v592
        %v1073 = vunpack.c.l.b16 %v593
        %v1074 = vunpack.c.l.b16 %v594
        %v1075 = vunpack.c.l.b16 %v595
        %v1076 = vunpack.c.l.b16 %v596
        %v1077 = vunpack.c.l.b16 %v597
        %v1078 = vunpack.c.l.b16 %v598
        %v1079 = vunpack.c.l.b16 %v599
        %v1080 = vunpack.c.l.b16 %v600
        %v1081 = vunpack.c.l.b16 %v601
        %v1082 = vunpack.c.l.b16 %v602
        %v1083 = vunpack.c.l.b16 %v603
        %v1084 = vunpack.c.l.b16 %v604
        %v1085 = vunpack.c.l.b16 %v605
        %v1086 = vunpack.c.l.b16 %v606
        %v1087 = vpack.c.b16 %v1024, %v1023
        %v1088 = vpack.c.b16 %v1026, %v1025
        %v1089 = vpack.c.b16 %v1028, %v1027
        %v1090 = vpack.c.b16 %v1030, %v1029
        %v1091 = vpack.c.b16 %v1032, %v1031
        %v1092 = vpack.c.b16 %v1034, %v1033
        %v1093 = vpack.c.b16 %v1036, %v1035
        %v1094 = vpack.c.b16 %v1038, %v1037
        %v1095 = vpack.c.b16 %v1040, %v1039
        %v1096 = vpack.c.b16 %v1042, %v1041
        %v1097 = vpack.c.b16 %v1044, %v1043
        %v1098 = vpack.c.b16 %v1046, %v1045
        %v1099 = vpack.c.b16 %v1048, %v1047
        %v1100 = vpack.c.b16 %v1050, %v1049
        %v1101 = vpack.c.b16 %v1052, %v1051
        %v1102 = vpack.c.b16 %v1054, %v1053
        %v1103 = vpack.c.b16 %v1056, %v1055
        %v1104 = vpack.c.b16 %v1058, %v1057
        %v1105 = vpack.c.b16 %v1060, %v1059
        %v1106 = vpack.c.b16 %v1062, %v1061
        %v1107 = vpack.c.b16 %v1064, %v1063
        %v1108 = vpack.c.b16 %v1066, %v1065
        %v1109 = vpack.c.b16 %v1068, %v1067
        %v1110 = vpack.c.b16 %v1070, %v1069
        %v1111 = vpack.c.b16 %v1072, %v1071
        %v1112 = vpack.c.b16 %v1074, %v1073
        %v1113 = vpack.c.b16 %v1076, %v1075
        %v1114 = vpack.c.b16 %v1078, %v1077
        %v1115 = vpack.c.b16 %v1080, %v1079
        %v1116 = vpack.c.b16 %v1082, %v1081
        %v1117 = vpack.c.b16 %v1084, %v1083
        %v1118 = vpack.c.b16 %v1086, %v1085
        %1119 = vrot.lane.b32.xlu0 %v1087, 16
        %v1120 = vpop.permute.xlu0 %1119
        %1121 = vrot.lane.b32.xlu0 %v1088, 16
        %v1122 = vpop.permute.xlu0 %1121
        %1123 = vrot.lane.b32.xlu0 %v1089, 16
        %v1124 = vpop.permute.xlu0 %1123
        %1125 = vrot.lane.b32.xlu0 %v1090, 16
        %v1126 = vpop.permute.xlu0 %1125
        %1127 = vrot.lane.b32.xlu0 %v1091, 16
        %v1128 = vpop.permute.xlu0 %1127
        %1129 = vrot.lane.b32.xlu0 %v1092, 16
        %v1130 = vpop.permute.xlu0 %1129
        %1131 = vrot.lane.b32.xlu0 %v1093, 16
        %v1132 = vpop.permute.xlu0 %1131
        %1133 = vrot.lane.b32.xlu0 %v1094, 16
        %v1134 = vpop.permute.xlu0 %1133
        %1135 = vrot.lane.b32.xlu0 %v1095, 16
        %v1136 = vpop.permute.xlu0 %1135
        %1137 = vrot.lane.b32.xlu0 %v1096, 16
        %v1138 = vpop.permute.xlu0 %1137
        %1139 = vrot.lane.b32.xlu0 %v1097, 16
        %v1140 = vpop.permute.xlu0 %1139
        %1141 = vrot.lane.b32.xlu0 %v1098, 16
        %v1142 = vpop.permute.xlu0 %1141
        %1143 = vrot.lane.b32.xlu0 %v1099, 16
        %v1144 = vpop.permute.xlu0 %1143
        %1145 = vrot.lane.b32.xlu0 %v1100, 16
        %v1146 = vpop.permute.xlu0 %1145
        %1147 = vrot.lane.b32.xlu0 %v1101, 16
        %v1148 = vpop.permute.xlu0 %1147
        %1149 = vrot.lane.b32.xlu0 %v1102, 16
        %v1150 = vpop.permute.xlu0 %1149
        %1151 = vrot.lane.b32.xlu0 %v1103, 16
        %v1152 = vpop.permute.xlu0 %1151
        %1153 = vrot.lane.b32.xlu0 %v1104, 16
        %v1154 = vpop.permute.xlu0 %1153
        %1155 = vrot.lane.b32.xlu0 %v1105, 16
        %v1156 = vpop.permute.xlu0 %1155
        %1157 = vrot.lane.b32.xlu0 %v1106, 16
        %v1158 = vpop.permute.xlu0 %1157
        %1159 = vrot.lane.b32.xlu0 %v1107, 16
        %v1160 = vpop.permute.xlu0 %1159
        %1161 = vrot.lane.b32.xlu0 %v1108, 16
        %v1162 = vpop.permute.xlu0 %1161
        %1163 = vrot.lane.b32.xlu0 %v1109, 16
        %v1164 = vpop.permute.xlu0 %1163
        %1165 = vrot.lane.b32.xlu0 %v1110, 16
        %v1166 = vpop.permute.xlu0 %1165
        %1167 = vrot.lane.b32.xlu0 %v1111, 16
        %v1168 = vpop.permute.xlu0 %1167
        %1169 = vrot.lane.b32.xlu0 %v1112, 16
        %v1170 = vpop.permute.xlu0 %1169
        %1171 = vrot.lane.b32.xlu0 %v1113, 16
        %v1172 = vpop.permute.xlu0 %1171
        %1173 = vrot.lane.b32.xlu0 %v1114, 16
        %v1174 = vpop.permute.xlu0 %1173
        %1175 = vrot.lane.b32.xlu0 %v1115, 16
        %v1176 = vpop.permute.xlu0 %1175
        %1177 = vrot.lane.b32.xlu0 %v1116, 16
        %v1178 = vpop.permute.xlu0 %1177
        %1179 = vrot.lane.b32.xlu0 %v1117, 16
        %v1180 = vpop.permute.xlu0 %1179
        %1181 = vrot.lane.b32.xlu0 %v1118, 16
        %v1182 = vpop.permute.xlu0 %1181
        %v1247 = vunpack.c.l.b16 %v607
        %v1248 = vunpack.c.l.b16 %v608
        %v1249 = vunpack.c.l.b16 %v609
        %v1250 = vunpack.c.l.b16 %v610
        %v1251 = vunpack.c.l.b16 %v611
        %v1252 = vunpack.c.l.b16 %v612
        %v1253 = vunpack.c.l.b16 %v613
        %v1254 = vunpack.c.l.b16 %v614
        %v1255 = vunpack.c.l.b16 %v615
        %v1256 = vunpack.c.l.b16 %v616
        %v1257 = vunpack.c.l.b16 %v617
        %v1258 = vunpack.c.l.b16 %v618
        %v1259 = vunpack.c.l.b16 %v619
        %v1260 = vunpack.c.l.b16 %v620
        %v1261 = vunpack.c.l.b16 %v621
        %v1262 = vunpack.c.l.b16 %v622
        %v1263 = vunpack.c.l.b16 %v623
        %v1264 = vunpack.c.l.b16 %v624
        %v1265 = vunpack.c.l.b16 %v625
        %v1266 = vunpack.c.l.b16 %v626
        %v1267 = vunpack.c.l.b16 %v627
        %v1268 = vunpack.c.l.b16 %v628
        %v1269 = vunpack.c.l.b16 %v629
        %v1270 = vunpack.c.l.b16 %v630
        %v1271 = vunpack.c.l.b16 %v631
        %v1272 = vunpack.c.l.b16 %v632
        %v1273 = vunpack.c.l.b16 %v633
        %v1274 = vunpack.c.l.b16 %v634
        %v1275 = vunpack.c.l.b16 %v635
        %v1276 = vunpack.c.l.b16 %v636
        %v1277 = vunpack.c.l.b16 %v637
        %v1278 = vunpack.c.l.b16 %v638
        %v1279 = vunpack.c.l.b16 %v639
        %v1280 = vunpack.c.l.b16 %v640
        %v1281 = vunpack.c.l.b16 %v641
        %v1282 = vunpack.c.l.b16 %v642
        %v1283 = vunpack.c.l.b16 %v643
        %v1284 = vunpack.c.l.b16 %v644
        %v1285 = vunpack.c.l.b16 %v645
        %v1286 = vunpack.c.l.b16 %v646
        %v1287 = vunpack.c.l.b16 %v647
        %v1288 = vunpack.c.l.b16 %v648
        %v1289 = vunpack.c.l.b16 %v649
        %v1290 = vunpack.c.l.b16 %v650
        %v1291 = vunpack.c.l.b16 %v651
        %v1292 = vunpack.c.l.b16 %v652
        %v1293 = vunpack.c.l.b16 %v653
        %v1294 = vunpack.c.l.b16 %v654
        %v1295 = vunpack.c.l.b16 %v655
        %v1296 = vunpack.c.l.b16 %v656
        %v1297 = vunpack.c.l.b16 %v657
        %v1298 = vunpack.c.l.b16 %v658
        %v1299 = vunpack.c.l.b16 %v659
        %v1300 = vunpack.c.l.b16 %v660
        %v1301 = vunpack.c.l.b16 %v661
        %v1302 = vunpack.c.l.b16 %v662
        %v1303 = vunpack.c.l.b16 %v663
        %v1304 = vunpack.c.l.b16 %v664
        %v1305 = vunpack.c.l.b16 %v665
        %v1306 = vunpack.c.l.b16 %v666
        %v1307 = vunpack.c.l.b16 %v667
        %v1308 = vunpack.c.l.b16 %v668
        %v1309 = vunpack.c.l.b16 %v669
        %v1310 = vunpack.c.l.b16 %v670
        %v1311 = vpack.c.b16 %v1248, %v1247
        %v1312 = vpack.c.b16 %v1250, %v1249
        %v1313 = vpack.c.b16 %v1252, %v1251
        %v1314 = vpack.c.b16 %v1254, %v1253
        %v1315 = vpack.c.b16 %v1256, %v1255
        %v1316 = vpack.c.b16 %v1258, %v1257
        %v1317 = vpack.c.b16 %v1260, %v1259
        %v1318 = vpack.c.b16 %v1262, %v1261
        %v1319 = vpack.c.b16 %v1264, %v1263
        %v1320 = vpack.c.b16 %v1266, %v1265
        %v1321 = vpack.c.b16 %v1268, %v1267
        %v1322 = vpack.c.b16 %v1270, %v1269
        %v1323 = vpack.c.b16 %v1272, %v1271
        %v1324 = vpack.c.b16 %v1274, %v1273
        %v1325 = vpack.c.b16 %v1276, %v1275
        %v1326 = vpack.c.b16 %v1278, %v1277
        %v1327 = vpack.c.b16 %v1280, %v1279
        %v1328 = vpack.c.b16 %v1282, %v1281
        %v1329 = vpack.c.b16 %v1284, %v1283
        %v1330 = vpack.c.b16 %v1286, %v1285
        %v1331 = vpack.c.b16 %v1288, %v1287
        %v1332 = vpack.c.b16 %v1290, %v1289
        %v1333 = vpack.c.b16 %v1292, %v1291
        %v1334 = vpack.c.b16 %v1294, %v1293
        %v1335 = vpack.c.b16 %v1296, %v1295
        %v1336 = vpack.c.b16 %v1298, %v1297
        %v1337 = vpack.c.b16 %v1300, %v1299
        %v1338 = vpack.c.b16 %v1302, %v1301
        %v1339 = vpack.c.b16 %v1304, %v1303
        %v1340 = vpack.c.b16 %v1306, %v1305
        %v1341 = vpack.c.b16 %v1308, %v1307
        %v1342 = vpack.c.b16 %v1310, %v1309
        %1343 = vrot.lane.b32.xlu0 %v1311, 32
        %v1344 = vpop.permute.xlu0 %1343
        %1345 = vrot.lane.b32.xlu0 %v1312, 32
        %v1346 = vpop.permute.xlu0 %1345
        %1347 = vrot.lane.b32.xlu0 %v1313, 32
        %v1348 = vpop.permute.xlu0 %1347
        %1349 = vrot.lane.b32.xlu0 %v1314, 32
        %v1350 = vpop.permute.xlu0 %1349
        %1351 = vrot.lane.b32.xlu0 %v1315, 32
        %v1352 = vpop.permute.xlu0 %1351
        %1353 = vrot.lane.b32.xlu0 %v1316, 32
        %v1354 = vpop.permute.xlu0 %1353
        %1355 = vrot.lane.b32.xlu0 %v1317, 32
        %v1356 = vpop.permute.xlu0 %1355
        %1357 = vrot.lane.b32.xlu0 %v1318, 32
        %v1358 = vpop.permute.xlu0 %1357
        %1359 = vrot.lane.b32.xlu0 %v1319, 32
        %v1360 = vpop.permute.xlu0 %1359
        %1361 = vrot.lane.b32.xlu0 %v1320, 32
        %v1362 = vpop.permute.xlu0 %1361
        %1363 = vrot.lane.b32.xlu0 %v1321, 32
        %v1364 = vpop.permute.xlu0 %1363
        %1365 = vrot.lane.b32.xlu0 %v1322, 32
        %v1366 = vpop.permute.xlu0 %1365
        %1367 = vrot.lane.b32.xlu0 %v1323, 32
        %v1368 = vpop.permute.xlu0 %1367
        %1369 = vrot.lane.b32.xlu0 %v1324, 32
        %v1370 = vpop.permute.xlu0 %1369
        %1371 = vrot.lane.b32.xlu0 %v1325, 32
        %v1372 = vpop.permute.xlu0 %1371
        %1373 = vrot.lane.b32.xlu0 %v1326, 32
        %v1374 = vpop.permute.xlu0 %1373
        %1375 = vrot.lane.b32.xlu0 %v1327, 32
        %v1376 = vpop.permute.xlu0 %1375
        %1377 = vrot.lane.b32.xlu0 %v1328, 32
        %v1378 = vpop.permute.xlu0 %1377
        %1379 = vrot.lane.b32.xlu0 %v1329, 32
        %v1380 = vpop.permute.xlu0 %1379
        %1381 = vrot.lane.b32.xlu0 %v1330, 32
        %v1382 = vpop.permute.xlu0 %1381
        %1383 = vrot.lane.b32.xlu0 %v1331, 32
        %v1384 = vpop.permute.xlu0 %1383
        %1385 = vrot.lane.b32.xlu0 %v1332, 32
        %v1386 = vpop.permute.xlu0 %1385
        %1387 = vrot.lane.b32.xlu0 %v1333, 32
        %v1388 = vpop.permute.xlu0 %1387
        %1389 = vrot.lane.b32.xlu0 %v1334, 32
        %v1390 = vpop.permute.xlu0 %1389
        %1391 = vrot.lane.b32.xlu0 %v1335, 32
        %v1392 = vpop.permute.xlu0 %1391
        %1393 = vrot.lane.b32.xlu0 %v1336, 32
        %v1394 = vpop.permute.xlu0 %1393
        %1395 = vrot.lane.b32.xlu0 %v1337, 32
        %v1396 = vpop.permute.xlu0 %1395
        %1397 = vrot.lane.b32.xlu0 %v1338, 32
        %v1398 = vpop.permute.xlu0 %1397
        %1399 = vrot.lane.b32.xlu0 %v1339, 32
        %v1400 = vpop.permute.xlu0 %1399
        %1401 = vrot.lane.b32.xlu0 %v1340, 32
        %v1402 = vpop.permute.xlu0 %1401
        %1403 = vrot.lane.b32.xlu0 %v1341, 32
        %v1404 = vpop.permute.xlu0 %1403
        %1405 = vrot.lane.b32.xlu0 %v1342, 32
        %v1406 = vpop.permute.xlu0 %1405
        %v1471 = vunpack.c.l.b16 %v671
        %v1472 = vunpack.c.l.b16 %v672
        %v1473 = vunpack.c.l.b16 %v673
        %v1474 = vunpack.c.l.b16 %v674
        %v1475 = vunpack.c.l.b16 %v675
        %v1476 = vunpack.c.l.b16 %v676
        %v1477 = vunpack.c.l.b16 %v677
        %v1478 = vunpack.c.l.b16 %v678
        %v1479 = vunpack.c.l.b16 %v679
        %v1480 = vunpack.c.l.b16 %v680
        %v1481 = vunpack.c.l.b16 %v681
        %v1482 = vunpack.c.l.b16 %v682
        %v1483 = vunpack.c.l.b16 %v683
        %v1484 = vunpack.c.l.b16 %v684
        %v1485 = vunpack.c.l.b16 %v685
        %v1486 = vunpack.c.l.b16 %v686
        %v1487 = vunpack.c.l.b16 %v687
        %v1488 = vunpack.c.l.b16 %v688
        %v1489 = vunpack.c.l.b16 %v689
        %v1490 = vunpack.c.l.b16 %v690
        %v1491 = vunpack.c.l.b16 %v691
        %v1492 = vunpack.c.l.b16 %v692
        %v1493 = vunpack.c.l.b16 %v693
        %v1494 = vunpack.c.l.b16 %v694
        %v1495 = vunpack.c.l.b16 %v695
        %v1496 = vunpack.c.l.b16 %v696
        %v1497 = vunpack.c.l.b16 %v697
        %v1498 = vunpack.c.l.b16 %v698
        %v1499 = vunpack.c.l.b16 %v699
        %v1500 = vunpack.c.l.b16 %v700
        %v1501 = vunpack.c.l.b16 %v701
        %v1502 = vunpack.c.l.b16 %v702
        %v1503 = vunpack.c.l.b16 %v703
        %v1504 = vunpack.c.l.b16 %v704
        %v1505 = vunpack.c.l.b16 %v705
        %v1506 = vunpack.c.l.b16 %v706
        %v1507 = vunpack.c.l.b16 %v707
        %v1508 = vunpack.c.l.b16 %v708
        %v1509 = vunpack.c.l.b16 %v709
        %v1510 = vunpack.c.l.b16 %v710
        %v1511 = vunpack.c.l.b16 %v711
        %v1512 = vunpack.c.l.b16 %v712
        %v1513 = vunpack.c.l.b16 %v713
        %v1514 = vunpack.c.l.b16 %v714
        %v1515 = vunpack.c.l.b16 %v715
        %v1516 = vunpack.c.l.b16 %v716
        %v1517 = vunpack.c.l.b16 %v717
        %v1518 = vunpack.c.l.b16 %v718
        %v1519 = vunpack.c.l.b16 %v719
        %v1520 = vunpack.c.l.b16 %v720
        %v1521 = vunpack.c.l.b16 %v721
        %v1522 = vunpack.c.l.b16 %v722
        %v1523 = vunpack.c.l.b16 %v723
        %v1524 = vunpack.c.l.b16 %v724
        %v1525 = vunpack.c.l.b16 %v725
        %v1526 = vunpack.c.l.b16 %v726
        %v1527 = vunpack.c.l.b16 %v727
        %v1528 = vunpack.c.l.b16 %v728
        %v1529 = vunpack.c.l.b16 %v729
        %v1530 = vunpack.c.l.b16 %v730
        %v1531 = vunpack.c.l.b16 %v731
        %v1532 = vunpack.c.l.b16 %v732
        %v1533 = vunpack.c.l.b16 %v733
        %v1534 = vunpack.c.l.b16 %v734
        %v1535 = vpack.c.b16 %v1472, %v1471
        %v1536 = vpack.c.b16 %v1474, %v1473
        %v1537 = vpack.c.b16 %v1476, %v1475
        %v1538 = vpack.c.b16 %v1478, %v1477
        %v1539 = vpack.c.b16 %v1480, %v1479
        %v1540 = vpack.c.b16 %v1482, %v1481
        %v1541 = vpack.c.b16 %v1484, %v1483
        %v1542 = vpack.c.b16 %v1486, %v1485
        %v1543 = vpack.c.b16 %v1488, %v1487
        %v1544 = vpack.c.b16 %v1490, %v1489
        %v1545 = vpack.c.b16 %v1492, %v1491
        %v1546 = vpack.c.b16 %v1494, %v1493
        %v1547 = vpack.c.b16 %v1496, %v1495
        %v1548 = vpack.c.b16 %v1498, %v1497
        %v1549 = vpack.c.b16 %v1500, %v1499
        %v1550 = vpack.c.b16 %v1502, %v1501
        %v1551 = vpack.c.b16 %v1504, %v1503
        %v1552 = vpack.c.b16 %v1506, %v1505
        %v1553 = vpack.c.b16 %v1508, %v1507
        %v1554 = vpack.c.b16 %v1510, %v1509
        %v1555 = vpack.c.b16 %v1512, %v1511
        %v1556 = vpack.c.b16 %v1514, %v1513
        %v1557 = vpack.c.b16 %v1516, %v1515
        %v1558 = vpack.c.b16 %v1518, %v1517
        %v1559 = vpack.c.b16 %v1520, %v1519
        %v1560 = vpack.c.b16 %v1522, %v1521
        %v1561 = vpack.c.b16 %v1524, %v1523
        %v1562 = vpack.c.b16 %v1526, %v1525
        %v1563 = vpack.c.b16 %v1528, %v1527
        %v1564 = vpack.c.b16 %v1530, %v1529
        %v1565 = vpack.c.b16 %v1532, %v1531
        %v1566 = vpack.c.b16 %v1534, %v1533
        %1567 = vrot.lane.b32.xlu0 %v1535, 48
        %v1568 = vpop.permute.xlu0 %1567
        %1569 = vrot.lane.b32.xlu0 %v1536, 48
        %v1570 = vpop.permute.xlu0 %1569
        %1571 = vrot.lane.b32.xlu0 %v1537, 48
        %v1572 = vpop.permute.xlu0 %1571
        %1573 = vrot.lane.b32.xlu0 %v1538, 48
        %v1574 = vpop.permute.xlu0 %1573
        %1575 = vrot.lane.b32.xlu0 %v1539, 48
        %v1576 = vpop.permute.xlu0 %1575
        %1577 = vrot.lane.b32.xlu0 %v1540, 48
        %v1578 = vpop.permute.xlu0 %1577
        %1579 = vrot.lane.b32.xlu0 %v1541, 48
        %v1580 = vpop.permute.xlu0 %1579
        %1581 = vrot.lane.b32.xlu0 %v1542, 48
        %v1582 = vpop.permute.xlu0 %1581
        %1583 = vrot.lane.b32.xlu0 %v1543, 48
        %v1584 = vpop.permute.xlu0 %1583
        %1585 = vrot.lane.b32.xlu0 %v1544, 48
        %v1586 = vpop.permute.xlu0 %1585
        %1587 = vrot.lane.b32.xlu0 %v1545, 48
        %v1588 = vpop.permute.xlu0 %1587
        %1589 = vrot.lane.b32.xlu0 %v1546, 48
        %v1590 = vpop.permute.xlu0 %1589
        %1591 = vrot.lane.b32.xlu0 %v1547, 48
        %v1592 = vpop.permute.xlu0 %1591
        %1593 = vrot.lane.b32.xlu0 %v1548, 48
        %v1594 = vpop.permute.xlu0 %1593
        %1595 = vrot.lane.b32.xlu0 %v1549, 48
        %v1596 = vpop.permute.xlu0 %1595
        %1597 = vrot.lane.b32.xlu0 %v1550, 48
        %v1598 = vpop.permute.xlu0 %1597
        %1599 = vrot.lane.b32.xlu0 %v1551, 48
        %v1600 = vpop.permute.xlu0 %1599
        %1601 = vrot.lane.b32.xlu0 %v1552, 48
        %v1602 = vpop.permute.xlu0 %1601
        %1603 = vrot.lane.b32.xlu0 %v1553, 48
        %v1604 = vpop.permute.xlu0 %1603
        %1605 = vrot.lane.b32.xlu0 %v1554, 48
        %v1606 = vpop.permute.xlu0 %1605
        %1607 = vrot.lane.b32.xlu0 %v1555, 48
        %v1608 = vpop.permute.xlu0 %1607
        %1609 = vrot.lane.b32.xlu0 %v1556, 48
        %v1610 = vpop.permute.xlu0 %1609
        %1611 = vrot.lane.b32.xlu0 %v1557, 48
        %v1612 = vpop.permute.xlu0 %1611
        %1613 = vrot.lane.b32.xlu0 %v1558, 48
        %v1614 = vpop.permute.xlu0 %1613
        %1615 = vrot.lane.b32.xlu0 %v1559, 48
        %v1616 = vpop.permute.xlu0 %1615
        %1617 = vrot.lane.b32.xlu0 %v1560, 48
        %v1618 = vpop.permute.xlu0 %1617
        %1619 = vrot.lane.b32.xlu0 %v1561, 48
        %v1620 = vpop.permute.xlu0 %1619
        %1621 = vrot.lane.b32.xlu0 %v1562, 48
        %v1622 = vpop.permute.xlu0 %1621
        %1623 = vrot.lane.b32.xlu0 %v1563, 48
        %v1624 = vpop.permute.xlu0 %1623
        %1625 = vrot.lane.b32.xlu0 %v1564, 48
        %v1626 = vpop.permute.xlu0 %1625
        %1627 = vrot.lane.b32.xlu0 %v1565, 48
        %v1628 = vpop.permute.xlu0 %1627
        %1629 = vrot.lane.b32.xlu0 %v1566, 48
        %v1630 = vpop.permute.xlu0 %1629
        %v1695 = vunpack.c.l.b16 %v735
        %v1696 = vunpack.c.l.b16 %v736
        %v1697 = vunpack.c.l.b16 %v737
        %v1698 = vunpack.c.l.b16 %v738
        %v1699 = vunpack.c.l.b16 %v739
        %v1700 = vunpack.c.l.b16 %v740
        %v1701 = vunpack.c.l.b16 %v741
        %v1702 = vunpack.c.l.b16 %v742
        %v1703 = vunpack.c.l.b16 %v743
        %v1704 = vunpack.c.l.b16 %v744
        %v1705 = vunpack.c.l.b16 %v745
        %v1706 = vunpack.c.l.b16 %v746
        %v1707 = vunpack.c.l.b16 %v747
        %v1708 = vunpack.c.l.b16 %v748
        %v1709 = vunpack.c.l.b16 %v749
        %v1710 = vunpack.c.l.b16 %v750
        %v1711 = vunpack.c.l.b16 %v751
        %v1712 = vunpack.c.l.b16 %v752
        %v1713 = vunpack.c.l.b16 %v753
        %v1714 = vunpack.c.l.b16 %v754
        %v1715 = vunpack.c.l.b16 %v755
        %v1716 = vunpack.c.l.b16 %v756
        %v1717 = vunpack.c.l.b16 %v757
        %v1718 = vunpack.c.l.b16 %v758
        %v1719 = vunpack.c.l.b16 %v759
        %v1720 = vunpack.c.l.b16 %v760
        %v1721 = vunpack.c.l.b16 %v761
        %v1722 = vunpack.c.l.b16 %v762
        %v1723 = vunpack.c.l.b16 %v763
        %v1724 = vunpack.c.l.b16 %v764
        %v1725 = vunpack.c.l.b16 %v765
        %v1726 = vunpack.c.l.b16 %v766
        %v1727 = vunpack.c.l.b16 %v767
        %v1728 = vunpack.c.l.b16 %v768
        %v1729 = vunpack.c.l.b16 %v769
        %v1730 = vunpack.c.l.b16 %v770
        %v1731 = vunpack.c.l.b16 %v771
        %v1732 = vunpack.c.l.b16 %v772
        %v1733 = vunpack.c.l.b16 %v773
        %v1734 = vunpack.c.l.b16 %v774
        %v1735 = vunpack.c.l.b16 %v775
        %v1736 = vunpack.c.l.b16 %v776
        %v1737 = vunpack.c.l.b16 %v777
        %v1738 = vunpack.c.l.b16 %v778
        %v1739 = vunpack.c.l.b16 %v779
        %v1740 = vunpack.c.l.b16 %v780
        %v1741 = vunpack.c.l.b16 %v781
        %v1742 = vunpack.c.l.b16 %v782
        %v1743 = vunpack.c.l.b16 %v783
        %v1744 = vunpack.c.l.b16 %v784
        %v1745 = vunpack.c.l.b16 %v785
        %v1746 = vunpack.c.l.b16 %v786
        %v1747 = vunpack.c.l.b16 %v787
        %v1748 = vunpack.c.l.b16 %v788
        %v1749 = vunpack.c.l.b16 %v789
        %v1750 = vunpack.c.l.b16 %v790
        %v1751 = vunpack.c.l.b16 %v791
        %v1752 = vunpack.c.l.b16 %v792
        %v1753 = vunpack.c.l.b16 %v793
        %v1754 = vunpack.c.l.b16 %v794
        %v1755 = vunpack.c.l.b16 %v795
        %v1756 = vunpack.c.l.b16 %v796
        %v1757 = vunpack.c.l.b16 %v797
        %v1758 = vunpack.c.l.b16 %v798
        %v1759 = vpack.c.b16 %v1696, %v1695
        %v1760 = vpack.c.b16 %v1698, %v1697
        %v1761 = vpack.c.b16 %v1700, %v1699
        %v1762 = vpack.c.b16 %v1702, %v1701
        %v1763 = vpack.c.b16 %v1704, %v1703
        %v1764 = vpack.c.b16 %v1706, %v1705
        %v1765 = vpack.c.b16 %v1708, %v1707
        %v1766 = vpack.c.b16 %v1710, %v1709
        %v1767 = vpack.c.b16 %v1712, %v1711
        %v1768 = vpack.c.b16 %v1714, %v1713
        %v1769 = vpack.c.b16 %v1716, %v1715
        %v1770 = vpack.c.b16 %v1718, %v1717
        %v1771 = vpack.c.b16 %v1720, %v1719
        %v1772 = vpack.c.b16 %v1722, %v1721
        %v1773 = vpack.c.b16 %v1724, %v1723
        %v1774 = vpack.c.b16 %v1726, %v1725
        %v1775 = vpack.c.b16 %v1728, %v1727
        %v1776 = vpack.c.b16 %v1730, %v1729
        %v1777 = vpack.c.b16 %v1732, %v1731
        %v1778 = vpack.c.b16 %v1734, %v1733
        %v1779 = vpack.c.b16 %v1736, %v1735
        %v1780 = vpack.c.b16 %v1738, %v1737
        %v1781 = vpack.c.b16 %v1740, %v1739
        %v1782 = vpack.c.b16 %v1742, %v1741
        %v1783 = vpack.c.b16 %v1744, %v1743
        %v1784 = vpack.c.b16 %v1746, %v1745
        %v1785 = vpack.c.b16 %v1748, %v1747
        %v1786 = vpack.c.b16 %v1750, %v1749
        %v1787 = vpack.c.b16 %v1752, %v1751
        %v1788 = vpack.c.b16 %v1754, %v1753
        %v1789 = vpack.c.b16 %v1756, %v1755
        %v1790 = vpack.c.b16 %v1758, %v1757
        %1791 = vrot.lane.b32.xlu0 %v1759, 64
        %v1792 = vpop.permute.xlu0 %1791
        %1793 = vrot.lane.b32.xlu0 %v1760, 64
        %v1794 = vpop.permute.xlu0 %1793
        %1795 = vrot.lane.b32.xlu0 %v1761, 64
        %v1796 = vpop.permute.xlu0 %1795
        %1797 = vrot.lane.b32.xlu0 %v1762, 64
        %v1798 = vpop.permute.xlu0 %1797
        %1799 = vrot.lane.b32.xlu0 %v1763, 64
        %v1800 = vpop.permute.xlu0 %1799
        %1801 = vrot.lane.b32.xlu0 %v1764, 64
        %v1802 = vpop.permute.xlu0 %1801
        %1803 = vrot.lane.b32.xlu0 %v1765, 64
        %v1804 = vpop.permute.xlu0 %1803
        %1805 = vrot.lane.b32.xlu0 %v1766, 64
        %v1806 = vpop.permute.xlu0 %1805
        %1807 = vrot.lane.b32.xlu0 %v1767, 64
        %v1808 = vpop.permute.xlu0 %1807
        %1809 = vrot.lane.b32.xlu0 %v1768, 64
        %v1810 = vpop.permute.xlu0 %1809
        %1811 = vrot.lane.b32.xlu0 %v1769, 64
        %v1812 = vpop.permute.xlu0 %1811
        %1813 = vrot.lane.b32.xlu0 %v1770, 64
        %v1814 = vpop.permute.xlu0 %1813
        %1815 = vrot.lane.b32.xlu0 %v1771, 64
        %v1816 = vpop.permute.xlu0 %1815
        %1817 = vrot.lane.b32.xlu0 %v1772, 64
        %v1818 = vpop.permute.xlu0 %1817
        %1819 = vrot.lane.b32.xlu0 %v1773, 64
        %v1820 = vpop.permute.xlu0 %1819
        %1821 = vrot.lane.b32.xlu0 %v1774, 64
        %v1822 = vpop.permute.xlu0 %1821
        %1823 = vrot.lane.b32.xlu0 %v1775, 64
        %v1824 = vpop.permute.xlu0 %1823
        %1825 = vrot.lane.b32.xlu0 %v1776, 64
        %v1826 = vpop.permute.xlu0 %1825
        %1827 = vrot.lane.b32.xlu0 %v1777, 64
        %v1828 = vpop.permute.xlu0 %1827
        %1829 = vrot.lane.b32.xlu0 %v1778, 64
        %v1830 = vpop.permute.xlu0 %1829
        %1831 = vrot.lane.b32.xlu0 %v1779, 64
        %v1832 = vpop.permute.xlu0 %1831
        %1833 = vrot.lane.b32.xlu0 %v1780, 64
        %v1834 = vpop.permute.xlu0 %1833
        %1835 = vrot.lane.b32.xlu0 %v1781, 64
        %v1836 = vpop.permute.xlu0 %1835
        %1837 = vrot.lane.b32.xlu0 %v1782, 64
        %v1838 = vpop.permute.xlu0 %1837
        %1839 = vrot.lane.b32.xlu0 %v1783, 64
        %v1840 = vpop.permute.xlu0 %1839
        %1841 = vrot.lane.b32.xlu0 %v1784, 64
        %v1842 = vpop.permute.xlu0 %1841
        %1843 = vrot.lane.b32.xlu0 %v1785, 64
        %v1844 = vpop.permute.xlu0 %1843
        %1845 = vrot.lane.b32.xlu0 %v1786, 64
        %v1846 = vpop.permute.xlu0 %1845
        %1847 = vrot.lane.b32.xlu0 %v1787, 64
        %v1848 = vpop.permute.xlu0 %1847
        %1849 = vrot.lane.b32.xlu0 %v1788, 64
        %v1850 = vpop.permute.xlu0 %1849
        %1851 = vrot.lane.b32.xlu0 %v1789, 64
        %v1852 = vpop.permute.xlu0 %1851
        %1853 = vrot.lane.b32.xlu0 %v1790, 64
        %v1854 = vpop.permute.xlu0 %1853
        %vm1855 = vcmask 130048
        %v1858 = vsel %vm1855, %v927, %v1120
        %v1861 = vsel %vm1855, %v928, %v1122
        %v1864 = vsel %vm1855, %v929, %v1124
        %v1867 = vsel %vm1855, %v930, %v1126
        %v1870 = vsel %vm1855, %v931, %v1128
        %v1873 = vsel %vm1855, %v932, %v1130
        %v1876 = vsel %vm1855, %v933, %v1132
        %v1879 = vsel %vm1855, %v934, %v1134
        %v1882 = vsel %vm1855, %v935, %v1136
        %v1885 = vsel %vm1855, %v936, %v1138
        %v1888 = vsel %vm1855, %v937, %v1140
        %v1891 = vsel %vm1855, %v938, %v1142
        %v1894 = vsel %vm1855, %v939, %v1144
        %v1897 = vsel %vm1855, %v940, %v1146
        %v1900 = vsel %vm1855, %v941, %v1148
        %v1903 = vsel %vm1855, %v942, %v1150
        %v1906 = vsel %vm1855, %v943, %v1152
        %v1909 = vsel %vm1855, %v944, %v1154
        %v1912 = vsel %vm1855, %v945, %v1156
        %v1915 = vsel %vm1855, %v946, %v1158
        %v1918 = vsel %vm1855, %v947, %v1160
        %v1921 = vsel %vm1855, %v948, %v1162
        %v1924 = vsel %vm1855, %v949, %v1164
        %v1927 = vsel %vm1855, %v950, %v1166
        %v1930 = vsel %vm1855, %v951, %v1168
        %v1933 = vsel %vm1855, %v952, %v1170
        %v1936 = vsel %vm1855, %v953, %v1172
        %v1939 = vsel %vm1855, %v954, %v1174
        %v1942 = vsel %vm1855, %v955, %v1176
        %v1945 = vsel %vm1855, %v956, %v1178
        %v1948 = vsel %vm1855, %v957, %v1180
        %v1951 = vsel %vm1855, %v958, %v1182
        %vm1952 = vcmask 261120
        %v1954 = vsel %vm1952, %v1858, %v1344
        %v1956 = vsel %vm1952, %v1861, %v1346
        %v1958 = vsel %vm1952, %v1864, %v1348
        %v1960 = vsel %vm1952, %v1867, %v1350
        %v1962 = vsel %vm1952, %v1870, %v1352
        %v1964 = vsel %vm1952, %v1873, %v1354
        %v1966 = vsel %vm1952, %v1876, %v1356
        %v1968 = vsel %vm1952, %v1879, %v1358
        %v1970 = vsel %vm1952, %v1882, %v1360
        %v1972 = vsel %vm1952, %v1885, %v1362
        %v1974 = vsel %vm1952, %v1888, %v1364
        %v1976 = vsel %vm1952, %v1891, %v1366
        %v1978 = vsel %vm1952, %v1894, %v1368
        %v1980 = vsel %vm1952, %v1897, %v1370
        %v1982 = vsel %vm1952, %v1900, %v1372
        %v1984 = vsel %vm1952, %v1903, %v1374
        %v1986 = vsel %vm1952, %v1906, %v1376
        %v1988 = vsel %vm1952, %v1909, %v1378
        %v1990 = vsel %vm1952, %v1912, %v1380
        %v1992 = vsel %vm1952, %v1915, %v1382
        %v1994 = vsel %vm1952, %v1918, %v1384
        %v1996 = vsel %vm1952, %v1921, %v1386
        %v1998 = vsel %vm1952, %v1924, %v1388
        %v2000 = vsel %vm1952, %v1927, %v1390
        %v2002 = vsel %vm1952, %v1930, %v1392
        %v2004 = vsel %vm1952, %v1933, %v1394
        %v2006 = vsel %vm1952, %v1936, %v1396
        %v2008 = vsel %vm1952, %v1939, %v1398
        %v2010 = vsel %vm1952, %v1942, %v1400
        %v2012 = vsel %vm1952, %v1945, %v1402
        %v2014 = vsel %vm1952, %v1948, %v1404
        %v2016 = vsel %vm1952, %v1951, %v1406
        %vm2017 = vcmask 392192
        %v2019 = vsel %vm2017, %v1954, %v1568
        %v2021 = vsel %vm2017, %v1956, %v1570
        %v2023 = vsel %vm2017, %v1958, %v1572
        %v2025 = vsel %vm2017, %v1960, %v1574
        %v2027 = vsel %vm2017, %v1962, %v1576
        %v2029 = vsel %vm2017, %v1964, %v1578
        %v2031 = vsel %vm2017, %v1966, %v1580
        %v2033 = vsel %vm2017, %v1968, %v1582
        %v2035 = vsel %vm2017, %v1970, %v1584
        %v2037 = vsel %vm2017, %v1972, %v1586
        %v2039 = vsel %vm2017, %v1974, %v1588
        %v2041 = vsel %vm2017, %v1976, %v1590
        %v2043 = vsel %vm2017, %v1978, %v1592
        %v2045 = vsel %vm2017, %v1980, %v1594
        %v2047 = vsel %vm2017, %v1982, %v1596
        %v2049 = vsel %vm2017, %v1984, %v1598
        %v2051 = vsel %vm2017, %v1986, %v1600
        %v2053 = vsel %vm2017, %v1988, %v1602
        %v2055 = vsel %vm2017, %v1990, %v1604
        %v2057 = vsel %vm2017, %v1992, %v1606
        %v2059 = vsel %vm2017, %v1994, %v1608
        %v2061 = vsel %vm2017, %v1996, %v1610
        %v2063 = vsel %vm2017, %v1998, %v1612
        %v2065 = vsel %vm2017, %v2000, %v1614
        %v2067 = vsel %vm2017, %v2002, %v1616
        %v2069 = vsel %vm2017, %v2004, %v1618
        %v2071 = vsel %vm2017, %v2006, %v1620
        %v2073 = vsel %vm2017, %v2008, %v1622
        %v2075 = vsel %vm2017, %v2010, %v1624
        %v2077 = vsel %vm2017, %v2012, %v1626
        %v2079 = vsel %vm2017, %v2014, %v1628
        %v2081 = vsel %vm2017, %v2016, %v1630
        %vm2082 = vcmask 523264
        %v2084 = vsel %vm2082, %v2019, %v1792
        %v2086 = vsel %vm2082, %v2021, %v1794
        %v2088 = vsel %vm2082, %v2023, %v1796
        %v2090 = vsel %vm2082, %v2025, %v1798
        %v2092 = vsel %vm2082, %v2027, %v1800
        %v2094 = vsel %vm2082, %v2029, %v1802
        %v2096 = vsel %vm2082, %v2031, %v1804
        %v2098 = vsel %vm2082, %v2033, %v1806
        %v2100 = vsel %vm2082, %v2035, %v1808
        %v2102 = vsel %vm2082, %v2037, %v1810
        %v2104 = vsel %vm2082, %v2039, %v1812
        %v2106 = vsel %vm2082, %v2041, %v1814
        %v2108 = vsel %vm2082, %v2043, %v1816
        %v2110 = vsel %vm2082, %v2045, %v1818
        %v2112 = vsel %vm2082, %v2047, %v1820
        %v2114 = vsel %vm2082, %v2049, %v1822
        %v2116 = vsel %vm2082, %v2051, %v1824
        %v2118 = vsel %vm2082, %v2053, %v1826
        %v2120 = vsel %vm2082, %v2055, %v1828
        %v2122 = vsel %vm2082, %v2057, %v1830
        %v2124 = vsel %vm2082, %v2059, %v1832
        %v2126 = vsel %vm2082, %v2061, %v1834
        %v2128 = vsel %vm2082, %v2063, %v1836
        %v2130 = vsel %vm2082, %v2065, %v1838
        %v2132 = vsel %vm2082, %v2067, %v1840
        %v2134 = vsel %vm2082, %v2069, %v1842
        %v2136 = vsel %vm2082, %v2071, %v1844
        %v2138 = vsel %vm2082, %v2073, %v1846
        %v2140 = vsel %vm2082, %v2075, %v1848
        %v2142 = vsel %vm2082, %v2077, %v1850
        %v2144 = vsel %vm2082, %v2079, %v1852
        %v2146 = vsel %vm2082, %v2081, %v1854
        %v2147 = vld [vmem:[%s5] sm:$0xf]
        %v2148 = vld [vmem:[%s5 + $0x4] sm:$0xf]
        %v2149 = vld [vmem:[%s5 + $0x8] sm:$0xf]
        %v2150 = vld [vmem:[%s5 + $0xc] sm:$0xf]
        %v2151 = vld [vmem:[%s5 + $0x10] sm:$0xf]
        %v2152 = vld [vmem:[%s5 + $0x14] sm:$0xf]
        %v2153 = vld [vmem:[%s5 + $0x18] sm:$0xf]
        %v2154 = vld [vmem:[%s5 + $0x1c] sm:$0xf]
        %v2155 = vld [vmem:[%s6] sm:$0xff]
        %v2156 = vld [vmem:[%s6 + $0x8] sm:$0xff]
        %v2157 = vld [vmem:[%s6 + $0x10] sm:$0xff]
        %v2158 = vld [vmem:[%s6 + $0x18] sm:$0xff]
        %v2159 = vld [vmem:[%s6 + $0x20] sm:$0xff]
        %v2160 = vld [vmem:[%s6 + $0x28] sm:$0xff]
        %v2161 = vld [vmem:[%s6 + $0x30] sm:$0xff]
        %v2162 = vld [vmem:[%s6 + $0x38] sm:$0xff]
        %2164 = vset.pattern.permute.xlu0 0
        %2165 = vperm.xlu0 %2164, %v2155
        %v2166 = vpop.permute.xlu0 %2165
        %2169 = vset.pattern.permute.xlu0 0
        %2170 = vperm.xlu0 %2169, %v2156
        %v2171 = vpop.permute.xlu0 %2170
        %2174 = vset.pattern.permute.xlu0 0
        %2175 = vperm.xlu0 %2174, %v2157
        %v2176 = vpop.permute.xlu0 %2175
        %2179 = vset.pattern.permute.xlu0 0
        %2180 = vperm.xlu0 %2179, %v2158
        %v2181 = vpop.permute.xlu0 %2180
        %2184 = vset.pattern.permute.xlu0 0
        %2185 = vperm.xlu0 %2184, %v2159
        %v2186 = vpop.permute.xlu0 %2185
        %2189 = vset.pattern.permute.xlu0 0
        %2190 = vperm.xlu0 %2189, %v2160
        %v2191 = vpop.permute.xlu0 %2190
        %2194 = vset.pattern.permute.xlu0 0
        %2195 = vperm.xlu0 %2194, %v2161
        %v2196 = vpop.permute.xlu0 %2195
        %2199 = vset.pattern.permute.xlu0 0
        %2200 = vperm.xlu0 %2199, %v2162
        %v2201 = vpop.permute.xlu0 %2200
        %v2211 = vunpack.c.l.b16 %v2147
        %v2212 = vunpack.c.l.b16 %v2148
        %v2213 = vunpack.c.l.b16 %v2149
        %v2214 = vunpack.c.l.b16 %v2150
        %v2215 = vunpack.c.l.b16 %v2151
        %v2216 = vunpack.c.l.b16 %v2152
        %v2217 = vunpack.c.l.b16 %v2153
        %v2218 = vunpack.c.l.b16 %v2154
        %v2219 = vpack.c.b16 %v2212, %v2211
        %v2220 = vpack.c.b16 %v2214, %v2213
        %v2221 = vpack.c.b16 %v2216, %v2215
        %v2222 = vpack.c.b16 %v2218, %v2217
        %vm2223 = vcmask 654336
        %v2225 = vsel %vm2223, %v2219, 0
        %v2228 = vsel %vm2223, %v2220, 0
        %v2231 = vsel %vm2223, %v2221, 0
        %v2234 = vsel %vm2223, %v2222, 0
        %v2236 = vsel %vm2223, %v2084, 0
        %v2238 = vsel %vm2223, %v2086, 0
        %v2240 = vsel %vm2223, %v2088, 0
        %v2242 = vsel %vm2223, %v2090, 0
        %v2244 = vsel %vm2223, %v2092, 0
        %v2246 = vsel %vm2223, %v2094, 0
        %v2248 = vsel %vm2223, %v2096, 0
        %v2250 = vsel %vm2223, %v2098, 0
        %v2252 = vsel %vm2223, %v2100, 0
        %v2254 = vsel %vm2223, %v2102, 0
        %v2256 = vsel %vm2223, %v2104, 0
        %v2258 = vsel %vm2223, %v2106, 0
        %v2260 = vsel %vm2223, %v2108, 0
        %v2262 = vsel %vm2223, %v2110, 0
        %v2264 = vsel %vm2223, %v2112, 0
        %v2266 = vsel %vm2223, %v2114, 0
        %v2268 = vsel %vm2223, %v2116, 0
        %v2270 = vsel %vm2223, %v2118, 0
        %v2272 = vsel %vm2223, %v2120, 0
        %v2274 = vsel %vm2223, %v2122, 0
        %v2276 = vsel %vm2223, %v2124, 0
        %v2278 = vsel %vm2223, %v2126, 0
        %v2280 = vsel %vm2223, %v2128, 0
        %v2282 = vsel %vm2223, %v2130, 0
        %v2284 = vsel %vm2223, %v2132, 0
        %v2286 = vsel %vm2223, %v2134, 0
        %v2288 = vsel %vm2223, %v2136, 0
        %v2290 = vsel %vm2223, %v2138, 0
        %v2292 = vsel %vm2223, %v2140, 0
        %v2294 = vsel %vm2223, %v2142, 0
        %v2296 = vsel %vm2223, %v2144, 0
        %v2298 = vsel %vm2223, %v2146, 0
        %2300 = vmatprep.subr.bf16.mxu0 0
        %2301 = vmatpush1.bf16.xpose.msra.mxu0 %v2236
        %2302 = vmatprep.subr.bf16.mxu0 0
        %2303 = vmatpush1.bf16.xpose.msra.mxu0 %v2238
        %2304 = vmatprep.subr.bf16.mxu0 0
        %2305 = vmatpush1.bf16.xpose.msra.mxu0 %v2240
        %2306 = vmatprep.subr.bf16.mxu0 0
        %2307 = vmatpush1.bf16.xpose.msra.mxu0 %v2242
        %2308 = vmatprep.subr.bf16.mxu0 0
        %2309 = vmatpush1.bf16.xpose.msra.mxu0 %v2244
        %2310 = vmatprep.subr.bf16.mxu0 0
        %2311 = vmatpush1.bf16.xpose.msra.mxu0 %v2246
        %2312 = vmatprep.subr.bf16.mxu0 0
        %2313 = vmatpush1.bf16.xpose.msra.mxu0 %v2248
        %2314 = vmatprep.subr.bf16.mxu0 0
        %2315 = vmatpush1.bf16.xpose.msra.mxu0 %v2250
        %2316 = vmatprep.subr.bf16.mxu0 0
        %2317 = vmatpush1.bf16.xpose.msra.mxu0 %v2252
        %2318 = vmatprep.subr.bf16.mxu0 0
        %2319 = vmatpush1.bf16.xpose.msra.mxu0 %v2254
        %2320 = vmatprep.subr.bf16.mxu0 0
        %2321 = vmatpush1.bf16.xpose.msra.mxu0 %v2256
        %2322 = vmatprep.subr.bf16.mxu0 0
        %2323 = vmatpush1.bf16.xpose.msra.mxu0 %v2258
        %2324 = vmatprep.subr.bf16.mxu0 0
        %2325 = vmatpush1.bf16.xpose.msra.mxu0 %v2260
        %2326 = vmatprep.subr.bf16.mxu0 0
        %2327 = vmatpush1.bf16.xpose.msra.mxu0 %v2262
        %2328 = vmatprep.subr.bf16.mxu0 0
        %2329 = vmatpush1.bf16.xpose.msra.mxu0 %v2264
        %2330 = vmatprep.subr.bf16.mxu0 0
        %2331 = vmatpush1.bf16.xpose.msra.mxu0 %v2266
        %2332 = vmatprep.mubr.bf16.mxu0 0
        %2333 = vmatmul.mubr.bf16.gmra.mrb[0].mxu0 %v2225
        %v2334 = vpop.f32.mrb[0].mxu0
        %v2335 = vadd.f32 %v2166, %v2334
        %v2336 = vpop.f32.mrb[0].mxu0
        %v2337 = vadd.f32 %v2166, %v2336
        %v2338 = vpop.f32.mrb[0].mxu0
        %v2339 = vadd.f32 %v2171, %v2338
        %v2340 = vpop.f32.mrb[0].mxu0
        %v2341 = vadd.f32 %v2171, %v2340
        %2342 = vmatprep.mubr.bf16.mxu0 0
        %2343 = vmatmul.mubr.bf16.gmra.mrb[0].mxu0 %v2228
        %v2344 = vpop.f32.mrb[0].mxu0
        %v2345 = vadd.f32 %v2176, %v2344
        %v2346 = vpop.f32.mrb[0].mxu0
        %v2347 = vadd.f32 %v2176, %v2346
        %v2348 = vpop.f32.mrb[0].mxu0
        %v2349 = vadd.f32 %v2181, %v2348
        %v2350 = vpop.f32.mrb[0].mxu0
        %v2351 = vadd.f32 %v2181, %v2350
        %2352 = vmatprep.mubr.bf16.mxu0 0
        %2353 = vmatmul.mubr.bf16.gmra.mrb[0].mxu0 %v2231
        %v2354 = vpop.f32.mrb[0].mxu0
        %v2355 = vadd.f32 %v2186, %v2354
        %v2356 = vpop.f32.mrb[0].mxu0
        %v2357 = vadd.f32 %v2186, %v2356
        %v2358 = vpop.f32.mrb[0].mxu0
        %v2359 = vadd.f32 %v2191, %v2358
        %v2360 = vpop.f32.mrb[0].mxu0
        %v2361 = vadd.f32 %v2191, %v2360
        %2362 = vmatprep.mubr.bf16.mxu0 0
        %2363 = vmatmul.mubr.bf16.gmra.mrb[0].mxu0 %v2234
        %v2364 = vpop.f32.mrb[0].mxu0
        %v2365 = vadd.f32 %v2196, %v2364
        %v2366 = vpop.f32.mrb[0].mxu0
        %v2367 = vadd.f32 %v2196, %v2366
        %v2368 = vpop.f32.mrb[0].mxu0
        %v2369 = vadd.f32 %v2201, %v2368
        %v2370 = vpop.f32.mrb[0].mxu0
        %v2371 = vadd.f32 %v2201, %v2370
        %2372 = vdwg.mxu0
        %2373 = vmatprep.subr.bf16.mxu0 0
        %2374 = vmatpush1.bf16.xpose.msra.mxu0 %v2268
        %2375 = vmatprep.subr.bf16.mxu0 0
        %2376 = vmatpush1.bf16.xpose.msra.mxu0 %v2270
        %2377 = vmatprep.subr.bf16.mxu0 0
        %2378 = vmatpush1.bf16.xpose.msra.mxu0 %v2272
        %2379 = vmatprep.subr.bf16.mxu0 0
        %2380 = vmatpush1.bf16.xpose.msra.mxu0 %v2274
        %2381 = vmatprep.subr.bf16.mxu0 0
        %2382 = vmatpush1.bf16.xpose.msra.mxu0 %v2276
        %2383 = vmatprep.subr.bf16.mxu0 0
        %2384 = vmatpush1.bf16.xpose.msra.mxu0 %v2278
        %2385 = vmatprep.subr.bf16.mxu0 0
        %2386 = vmatpush1.bf16.xpose.msra.mxu0 %v2280
        %2387 = vmatprep.subr.bf16.mxu0 0
        %2388 = vmatpush1.bf16.xpose.msra.mxu0 %v2282
        %2389 = vmatprep.subr.bf16.mxu0 0
        %2390 = vmatpush1.bf16.xpose.msra.mxu0 %v2284
        %2391 = vmatprep.subr.bf16.mxu0 0
        %2392 = vmatpush1.bf16.xpose.msra.mxu0 %v2286
        %2393 = vmatprep.subr.bf16.mxu0 0
        %2394 = vmatpush1.bf16.xpose.msra.mxu0 %v2288
        %2395 = vmatprep.subr.bf16.mxu0 0
        %2396 = vmatpush1.bf16.xpose.msra.mxu0 %v2290
        %2397 = vmatprep.subr.bf16.mxu0 0
        %2398 = vmatpush1.bf16.xpose.msra.mxu0 %v2292
        %2399 = vmatprep.subr.bf16.mxu0 0
        %2400 = vmatpush1.bf16.xpose.msra.mxu0 %v2294
        %2401 = vmatprep.subr.bf16.mxu0 0
        %2402 = vmatpush1.bf16.xpose.msra.mxu0 %v2296
        %2403 = vmatprep.subr.bf16.mxu0 0
        %2404 = vmatpush1.bf16.xpose.msra.mxu0 %v2298
        %2405 = vmatprep.mubr.bf16.mxu0 0
        %2406 = vmatmul.mubr.bf16.gmra.mrb[0].mxu0 %v2225
        %v2407 = vpop.f32.mrb[0].mxu0
        %v2408 = vadd.f32 %v2166, %v2407
        %v2409 = vpop.f32.mrb[0].mxu0
        %v2410 = vadd.f32 %v2166, %v2409
        %v2411 = vpop.f32.mrb[0].mxu0
        %v2412 = vadd.f32 %v2171, %v2411
        %v2413 = vpop.f32.mrb[0].mxu0
        %v2414 = vadd.f32 %v2171, %v2413
        %2415 = vmatprep.mubr.bf16.mxu0 0
        %2416 = vmatmul.mubr.bf16.gmra.mrb[0].mxu0 %v2228
        %v2417 = vpop.f32.mrb[0].mxu0
        %v2418 = vadd.f32 %v2176, %v2417
        %v2419 = vpop.f32.mrb[0].mxu0
        %v2420 = vadd.f32 %v2176, %v2419
        %v2421 = vpop.f32.mrb[0].mxu0
        %v2422 = vadd.f32 %v2181, %v2421
        %v2423 = vpop.f32.mrb[0].mxu0
        %v2424 = vadd.f32 %v2181, %v2423
        %2425 = vmatprep.mubr.bf16.mxu0 0
        %2426 = vmatmul.mubr.bf16.gmra.mrb[0].mxu0 %v2231
        %v2427 = vpop.f32.mrb[0].mxu0
        %v2428 = vadd.f32 %v2186, %v2427
        %v2429 = vpop.f32.mrb[0].mxu0
        %v2430 = vadd.f32 %v2186, %v2429
        %v2431 = vpop.f32.mrb[0].mxu0
        %v2432 = vadd.f32 %v2191, %v2431
        %v2433 = vpop.f32.mrb[0].mxu0
        %v2434 = vadd.f32 %v2191, %v2433
        %2435 = vmatprep.mubr.bf16.mxu0 0
        %2436 = vmatmul.mubr.bf16.gmra.mrb[0].mxu0 %v2234
        %v2437 = vpop.f32.mrb[0].mxu0
        %v2438 = vadd.f32 %v2196, %v2437
        %v2439 = vpop.f32.mrb[0].mxu0
        %v2440 = vadd.f32 %v2196, %v2439
        %v2441 = vpop.f32.mrb[0].mxu0
        %v2442 = vadd.f32 %v2201, %v2441
        %v2443 = vpop.f32.mrb[0].mxu0
        %v2444 = vadd.f32 %v2201, %v2443
        %2445 = vdwg.mxu0
        %v2446 = vmax.f32 %v2335, 0.0
        %v2447 = vmax.f32 %v2337, 0.0
        %v2448 = vmax.f32 %v2408, 0.0
        %v2449 = vmax.f32 %v2410, 0.0
        %v2450 = vmax.f32 %v2339, 0.0
        %v2451 = vmax.f32 %v2341, 0.0
        %v2452 = vmax.f32 %v2412, 0.0
        %v2453 = vmax.f32 %v2414, 0.0
        %v2454 = vmax.f32 %v2345, 0.0
        %v2455 = vmax.f32 %v2347, 0.0
        %v2456 = vmax.f32 %v2418, 0.0
        %v2457 = vmax.f32 %v2420, 0.0
        %v2458 = vmax.f32 %v2349, 0.0
        %v2459 = vmax.f32 %v2351, 0.0
        %v2460 = vmax.f32 %v2422, 0.0
        %v2461 = vmax.f32 %v2424, 0.0
        %v2462 = vmax.f32 %v2355, 0.0
        %v2463 = vmax.f32 %v2357, 0.0
        %v2464 = vmax.f32 %v2428, 0.0
        %v2465 = vmax.f32 %v2430, 0.0
        %v2466 = vmax.f32 %v2359, 0.0
        %v2467 = vmax.f32 %v2361, 0.0
        %v2468 = vmax.f32 %v2432, 0.0
        %v2469 = vmax.f32 %v2434, 0.0
        %v2470 = vmax.f32 %v2365, 0.0
        %v2471 = vmax.f32 %v2367, 0.0
        %v2472 = vmax.f32 %v2438, 0.0
        %v2473 = vmax.f32 %v2440, 0.0
        %v2474 = vmax.f32 %v2369, 0.0
        %v2475 = vmax.f32 %v2371, 0.0
        %v2476 = vmax.f32 %v2442, 0.0
        %v2477 = vmax.f32 %v2444, 0.0
        %v2478 = vld [vmem:[%s7] sm:$0xf]
        %v2479 = vld [vmem:[%s7 + $0x4] sm:$0xf]
        %v2480 = vld [vmem:[%s7 + $0x8] sm:$0xf]
        %v2481 = vld [vmem:[%s7 + $0xc] sm:$0xf]
        %v2482 = vpack.c.bf16 %v2450, %v2446
        %v2483 = vpack.c.bf16 %v2451, %v2447
        %v2484 = vpack.c.bf16 %v2452, %v2448
        %v2485 = vpack.c.bf16 %v2453, %v2449
        %v2486 = vpack.c.bf16 %v2458, %v2454
        %v2487 = vpack.c.bf16 %v2459, %v2455
        %v2488 = vpack.c.bf16 %v2460, %v2456
        %v2489 = vpack.c.bf16 %v2461, %v2457
        %v2490 = vpack.c.bf16 %v2466, %v2462
        %v2491 = vpack.c.bf16 %v2467, %v2463
        %v2492 = vpack.c.bf16 %v2468, %v2464
        %v2493 = vpack.c.bf16 %v2469, %v2465
        %v2494 = vpack.c.bf16 %v2474, %v2470
        %v2495 = vpack.c.bf16 %v2475, %v2471
        %v2496 = vpack.c.bf16 %v2476, %v2472
        %v2497 = vpack.c.bf16 %v2477, %v2473
        %v2498 = vld [vmem:[%s8] sm:$0xff]
        %v2499 = vld [vmem:[%s8 + $0x8] sm:$0xff]
        %v2500 = vld [vmem:[%s8 + $0x10] sm:$0xff]
        %v2501 = vld [vmem:[%s8 + $0x18] sm:$0xff]
        %2503 = vset.pattern.permute.xlu0 0
        %2504 = vperm.xlu0 %2503, %v2498
        %v2505 = vpop.permute.xlu0 %2504
        %2508 = vset.pattern.permute.xlu0 0
        %2509 = vperm.xlu0 %2508, %v2499
        %v2510 = vpop.permute.xlu0 %2509
        %2513 = vset.pattern.permute.xlu0 0
        %2514 = vperm.xlu0 %2513, %v2500
        %v2515 = vpop.permute.xlu0 %2514
        %2518 = vset.pattern.permute.xlu0 0
        %2519 = vperm.xlu0 %2518, %v2501
        %v2520 = vpop.permute.xlu0 %2519
        %v2526 = vunpack.c.l.b16 %v2478
        %v2527 = vunpack.c.l.b16 %v2479
        %v2528 = vunpack.c.l.b16 %v2480
        %v2529 = vunpack.c.l.b16 %v2481
        %v2530 = vpack.c.b16 %v2527, %v2526
        %v2531 = vpack.c.b16 %v2529, %v2528
        %v2533 = vsel %vm2082, %v2530, 0
        %v2536 = vsel %vm2082, %v2531, 0
        %2538 = vmatprep.subr.bf16.mxu0 %v2483
        %2539 = vmatpush1.bf16.msra.mxu0 %v2482
        %2540 = vmatprep.subr.bf16.mxu0 %v2487
        %2541 = vmatpush1.bf16.msra.mxu0 %v2486
        %2542 = vmatprep.subr.bf16.mxu0 %v2491
        %2543 = vmatpush1.bf16.msra.mxu0 %v2490
        %2544 = vmatprep.subr.bf16.mxu0 %v2495
        %2545 = vmatpush1.bf16.msra.mxu0 %v2494
        %2546 = vmatprep.subr.bf16.mxu0 0
        %2547 = vmatpush1.bf16.msra.mxu0 0
        %2548 = vmatprep.subr.bf16.mxu0 0
        %2549 = vmatpush1.bf16.msra.mxu0 0
        %2550 = vmatprep.subr.bf16.mxu0 0
        %2551 = vmatpush1.bf16.msra.mxu0 0
        %2552 = vmatprep.subr.bf16.mxu0 0
        %2553 = vmatpush1.bf16.msra.mxu0 0
        %2554 = vmatprep.subr.bf16.mxu0 0
        %2555 = vmatpush1.bf16.msra.mxu0 0
        %2556 = vmatprep.subr.bf16.mxu0 0
        %2557 = vmatpush1.bf16.msra.mxu0 0
        %2558 = vmatprep.subr.bf16.mxu0 0
        %2559 = vmatpush1.bf16.msra.mxu0 0
        %2560 = vmatprep.subr.bf16.mxu0 0
        %2561 = vmatpush1.bf16.msra.mxu0 0
        %2562 = vmatprep.subr.bf16.mxu0 0
        %2563 = vmatpush1.bf16.msra.mxu0 0
        %2564 = vmatprep.subr.bf16.mxu0 0
        %2565 = vmatpush1.bf16.msra.mxu0 0
        %2566 = vmatprep.subr.bf16.mxu0 0
        %2567 = vmatpush1.bf16.msra.mxu0 0
        %2568 = vmatprep.subr.bf16.mxu0 0
        %2569 = vmatpush1.bf16.msra.mxu0 0
        %2570 = vmatprep.mubr.bf16.mxu0 0
        %2571 = vmatmul.mubr.bf16.gmra.mrb[0].mxu0 %v2533
        %v2572 = vpop.f32.mrb[0].mxu0
        %v2573 = vadd.f32 %v2505, %v2572
        %v2574 = vpop.f32.mrb[0].mxu0
        %v2575 = vadd.f32 %v2505, %v2574
        %v2576 = vpop.f32.mrb[0].mxu0
        %v2577 = vadd.f32 %v2510, %v2576
        %v2578 = vpop.f32.mrb[0].mxu0
        %v2579 = vadd.f32 %v2510, %v2578
        %2580 = vmatprep.mubr.bf16.mxu0 0
        %2581 = vmatmul.mubr.bf16.gmra.mrb[0].mxu0 %v2536
        %v2582 = vpop.f32.mrb[0].mxu0
        %v2583 = vadd.f32 %v2515, %v2582
        %v2584 = vpop.f32.mrb[0].mxu0
        %v2585 = vadd.f32 %v2515, %v2584
        %v2586 = vpop.f32.mrb[0].mxu0
        %v2587 = vadd.f32 %v2520, %v2586
        %v2588 = vpop.f32.mrb[0].mxu0
        %v2589 = vadd.f32 %v2520, %v2588
        %2590 = vdwg.mxu0
        %2591 = vmatprep.subr.bf16.mxu0 %v2485
        %2592 = vmatpush1.bf16.msra.mxu0 %v2484
        %2593 = vmatprep.subr.bf16.mxu0 %v2489
        %2594 = vmatpush1.bf16.msra.mxu0 %v2488
        %2595 = vmatprep.subr.bf16.mxu0 %v2493
        %2596 = vmatpush1.bf16.msra.mxu0 %v2492
        %2597 = vmatprep.subr.bf16.mxu0 %v2497
        %2598 = vmatpush1.bf16.msra.mxu0 %v2496
        %2599 = vmatprep.subr.bf16.mxu0 0
        %2600 = vmatpush1.bf16.msra.mxu0 0
        %2601 = vmatprep.subr.bf16.mxu0 0
        %2602 = vmatpush1.bf16.msra.mxu0 0
        %2603 = vmatprep.subr.bf16.mxu0 0
        %2604 = vmatpush1.bf16.msra.mxu0 0
        %2605 = vmatprep.subr.bf16.mxu0 0
        %2606 = vmatpush1.bf16.msra.mxu0 0
        %2607 = vmatprep.subr.bf16.mxu0 0
        %2608 = vmatpush1.bf16.msra.mxu0 0
        %2609 = vmatprep.subr.bf16.mxu0 0
        %2610 = vmatpush1.bf16.msra.mxu0 0
        %2611 = vmatprep.subr.bf16.mxu0 0
        %2612 = vmatpush1.bf16.msra.mxu0 0
        %2613 = vmatprep.subr.bf16.mxu0 0
        %2614 = vmatpush1.bf16.msra.mxu0 0
        %2615 = vmatprep.subr.bf16.mxu0 0
        %2616 = vmatpush1.bf16.msra.mxu0 0
        %2617 = vmatprep.subr.bf16.mxu0 0
        %2618 = vmatpush1.bf16.msra.mxu0 0
        %2619 = vmatprep.subr.bf16.mxu0 0
        %2620 = vmatpush1.bf16.msra.mxu0 0
        %2621 = vmatprep.subr.bf16.mxu0 0
        %2622 = vmatpush1.bf16.msra.mxu0 0
        %2623 = vmatprep.mubr.bf16.mxu0 0
        %2624 = vmatmul.mubr.bf16.gmra.mrb[0].mxu0 %v2533
        %v2625 = vpop.f32.mrb[0].mxu0
        %v2626 = vadd.f32 %v2505, %v2625
        %v2627 = vpop.f32.mrb[0].mxu0
        %v2628 = vadd.f32 %v2505, %v2627
        %v2629 = vpop.f32.mrb[0].mxu0
        %v2630 = vadd.f32 %v2510, %v2629
        %v2631 = vpop.f32.mrb[0].mxu0
        %v2632 = vadd.f32 %v2510, %v2631
        %2633 = vmatprep.mubr.bf16.mxu0 0
        %2634 = vmatmul.mubr.bf16.gmra.mrb[0].mxu0 %v2536
        %v2635 = vpop.f32.mrb[0].mxu0
        %v2636 = vadd.f32 %v2515, %v2635
        %v2637 = vpop.f32.mrb[0].mxu0
        %v2638 = vadd.f32 %v2515, %v2637
        %v2639 = vpop.f32.mrb[0].mxu0
        %v2640 = vadd.f32 %v2520, %v2639
        %v2641 = vpop.f32.mrb[0].mxu0
        %v2642 = vadd.f32 %v2520, %v2641
        %2643 = vdwg.mxu0
        %v2644 = vmax.f32 %v2573, 0.0
        %v2645 = vmax.f32 %v2575, 0.0
        %v2646 = vmax.f32 %v2626, 0.0
        %v2647 = vmax.f32 %v2628, 0.0
        %v2648 = vmax.f32 %v2577, 0.0
        %v2649 = vmax.f32 %v2579, 0.0
        %v2650 = vmax.f32 %v2630, 0.0
        %v2651 = vmax.f32 %v2632, 0.0
        %v2652 = vmax.f32 %v2583, 0.0
        %v2653 = vmax.f32 %v2585, 0.0
        %v2654 = vmax.f32 %v2636, 0.0
        %v2655 = vmax.f32 %v2638, 0.0
        %v2656 = vmax.f32 %v2587, 0.0
        %v2657 = vmax.f32 %v2589, 0.0
        %v2658 = vmax.f32 %v2640, 0.0
        %v2659 = vmax.f32 %v2642, 0.0
        %v2660 = vld [vmem:[%s9] sm:$0xff]
        %v2661 = vld [vmem:[%s9 + $0x8] sm:$0xff]
        %v2662 = vld [vmem:[%s9 + $0x10] sm:$0xff]
        %v2663 = vld [vmem:[%s9 + $0x18] sm:$0xff]
        %2665 = vset.pattern.permute.xlu0 0
        %2666 = vperm.xlu0 %2665, %v2660
        %v2667 = vpop.permute.xlu0 %2666
        %2670 = vset.pattern.permute.xlu0 0
        %2671 = vperm.xlu0 %2670, %v2661
        %v2672 = vpop.permute.xlu0 %2671
        %2675 = vset.pattern.permute.xlu0 0
        %2676 = vperm.xlu0 %2675, %v2662
        %v2677 = vpop.permute.xlu0 %2676
        %2680 = vset.pattern.permute.xlu0 0
        %2681 = vperm.xlu0 %2680, %v2663
        %v2682 = vpop.permute.xlu0 %2681
        %v2684 = vmul.f32 %v2644, %v2667
        %v2685 = vmul.f32 %v2645, %v2667
        %v2686 = vmul.f32 %v2646, %v2667
        %v2687 = vmul.f32 %v2647, %v2667
        %v2688 = vmul.f32 %v2648, %v2672
        %v2689 = vmul.f32 %v2649, %v2672
        %v2690 = vmul.f32 %v2650, %v2672
        %v2691 = vmul.f32 %v2651, %v2672
        %v2692 = vmul.f32 %v2652, %v2677
        %v2693 = vmul.f32 %v2653, %v2677
        %v2694 = vmul.f32 %v2654, %v2677
        %v2695 = vmul.f32 %v2655, %v2677
        %v2696 = vmul.f32 %v2656, %v2682
        %v2697 = vmul.f32 %v2657, %v2682
        %v2698 = vmul.f32 %v2658, %v2682
        %v2699 = vmul.f32 %v2659, %v2682
        %v2700 = vadd.f32 %v2684, %v2688
        %v2701 = vadd.f32 %v2700, %v2692
        %v2702 = vadd.f32 %v2701, %v2696
        %v2703 = vrot.slane %v2702, 4
        %v2704 = vadd.f32 %v2702, %v2703
        %v2705 = vrot.slane %v2704, 2
        %v2706 = vadd.f32 %v2704, %v2705
        %v2707 = vrot.slane %v2706, 1
        %v2708 = vadd.f32 %v2706, %v2707
        %v2709 = vadd.f32 %v2685, %v2689
        %v2710 = vadd.f32 %v2709, %v2693
        %v2711 = vadd.f32 %v2710, %v2697
        %v2712 = vrot.slane %v2711, 4
        %v2713 = vadd.f32 %v2711, %v2712
        %v2714 = vrot.slane %v2713, 2
        %v2715 = vadd.f32 %v2713, %v2714
        %v2716 = vrot.slane %v2715, 1
        %v2717 = vadd.f32 %v2715, %v2716
        %v2718 = vadd.f32 %v2686, %v2690
        %v2719 = vadd.f32 %v2718, %v2694
        %v2720 = vadd.f32 %v2719, %v2698
        %v2721 = vrot.slane %v2720, 4
        %v2722 = vadd.f32 %v2720, %v2721
        %v2723 = vrot.slane %v2722, 2
        %v2724 = vadd.f32 %v2722, %v2723
        %v2725 = vrot.slane %v2724, 1
        %v2726 = vadd.f32 %v2724, %v2725
        %v2727 = vadd.f32 %v2687, %v2691
        %v2728 = vadd.f32 %v2727, %v2695
        %v2729 = vadd.f32 %v2728, %v2699
        %v2730 = vrot.slane %v2729, 4
        %v2731 = vadd.f32 %v2729, %v2730
        %v2732 = vrot.slane %v2731, 2
        %v2733 = vadd.f32 %v2731, %v2732
        %v2734 = vrot.slane %v2733, 1
        %v2735 = vadd.f32 %v2733, %v2734
        %v2736 = vld [vmem:[#allocation2] sm:$0x1]
        %2738 = vset.pattern.permute.xlu0 0
        %2739 = vperm.xlu0 %2738, %v2736
        %v2740 = vpop.permute.xlu0 %2739
        %v2742 = vlaneseq
        %v2743 = vshrl.u32 %v2742, 7
        %v2744 = vsub.s32 0, %v2743
        %v2745 = vrot.slane %v2740, %v2744
        %v2746 = vadd.f32 %v2708, %v2745
        %v2747 = vadd.f32 %v2717, %v2745
        %v2748 = vadd.f32 %v2726, %v2745
        %v2749 = vadd.f32 %v2735, %v2745
        %v2750 = vxor.u32 %v2746, 2147483648
        %v2751 = vxor.u32 %v2747, 2147483648
        %v2752 = vxor.u32 %v2748, 2147483648
        %v2753 = vxor.u32 %v2749, 2147483648
        %v2754 = vmul.f32 %v2750, 1.442695
        %v2755 = vpow.pop %v2754
        %v2756 = vmul.f32 %v2751, 1.442695
        %v2757 = vpow.pop %v2756
        %v2758 = vmul.f32 %v2752, 1.442695
        %v2759 = vpow.pop %v2758
        %v2760 = vmul.f32 %v2753, 1.442695
        %v2761 = vpow.pop %v2760
        %v2762 = vadd.f32 %v2755, 1.0
        %v2763 = vadd.f32 %v2757, 1.0
        %v2764 = vadd.f32 %v2759, 1.0
        %v2765 = vadd.f32 %v2761, 1.0
        %v2766 = vrcp.pop %v2762
        %v2767 = vmul.f32 1.0, %v2766
        %v2768 = vrcp.pop %v2763
        %v2769 = vmul.f32 1.0, %v2768
        %v2770 = vrcp.pop %v2764
        %v2771 = vmul.f32 1.0, %v2770
        %v2772 = vrcp.pop %v2765
        %v2773 = vmul.f32 1.0, %v2772
        %v2778 = vcombine.low %v2767, %v2769
        %v2779 = vcombine.low %v2771, %v2773
        %v2781 = vunpack.c.l.s4 1966171168
        %v2782 = vunpack.c.0.s8 %v2781
        %v2783 = vlaneseq
        %v2784 = vshrl.u32 %v2783, 7
        %v2785 = vsub.s32 %v2782, %v2784
        %v2786 = vrot.slane %v2778, %v2785
        %v2788 = vunpack.c.l.s4 1966171168
        %v2789 = vunpack.c.0.s8 %v2788
        %v2790 = vlaneseq
        %v2791 = vshrl.u32 %v2790, 7
        %v2792 = vsub.s32 %v2789, %v2791
        %v2793 = vrot.slane %v2779, %v2792
        %v2794 = vcombine.low %v2786, %v2793
        %v2796 = vunpack.c.l.s4 1966171168
        %v2797 = vunpack.c.0.s8 %v2796
        %v2798 = vlaneseq
        %v2799 = vshrl.u32 %v2798, 7
        %v2800 = vsub.s32 %v2797, %v2799
        %v2801 = vrot.slane %v2794, %v2800
        %v2803 = vlaneseq
        %vm2804 = vcmp.ge.s32.totalorder %v2803, 0
        %vm2805 = vcmp.lt.s32.totalorder %v2803, 512
        %vm2806 = vmand %vm2804, %vm2805
        %2807 = vst.msk [vmem:[%s446] sm:$0xf] %vm2806, %v2801
        %s2808 = sand.u32 %s291, 1
        %s2809 = scalar_lea.sflag [#allocation4], %s2808
        %s2810 = sand.u32 %s291, 1
        %s2811 = smul.addr %s2810, 4
        %s2812 = scalar_lea.vmem [#allocation3], %s2811
        // Predicated region
        $region65: #{tpu_custom_call.1} parent=63 // pred_check
          %p2813 = pneg %p301
        $region66: #{tpu_custom_call.1} parent=63 // pred_check_branch
          %2815 = sbr.rel (%p2813) target = $region68
        $region67: #{tpu_custom_call.1} parent=63 // pred_region
          %s2816 = smul.u32 4, %s27
          %s2818 = ssub.s32 64, 64
          %2819 = vsyncadd %s2809, %s2818
          %s2820 = smul.addr %s2816, 16
          %s2821 = scalar_lea.hbm %s11, %s2820
          %s2823 = sshll.u32 %s2812, 4
          %s2824 = int_to_ptr.vmem [resolvable:$true] %s2823
          %2826 = dma.vmem_to_hbm [thread:$0]  %s2824, 64, %s2821, %s2809
        $region68: #{tpu_custom_call.1} parent=63 // pred_fallthru
          _
      $region64: #{tpu_custom_call.1} parent=5 // pred_fallthru
        _
      %p2827 = scmp.le.s32.totalorder 2, %s22
      // Predicated region
      $region69: #{tpu_custom_call.1} parent=5 // pred_check
        %p2828 = pneg %p2827
      $region70: #{tpu_custom_call.1} parent=5 // pred_check_branch
        %2830 = sbr.rel (%p2828) target = $region72
      $region71: #{tpu_custom_call.1} parent=5 // pred_region
        %s2831 = ssub.s32 %s22, 2
        // Predicated region
        $region73: #{tpu_custom_call.1} parent=71 // pred_check
          %p2832 = pneg %p307
        $region74: #{tpu_custom_call.1} parent=71 // pred_check_branch
          %2834 = sbr.rel (%p2832) target = $region76
        $region75: #{tpu_custom_call.1} parent=71 // pred_region
          %s2835 = sand.u32 %s292, 1
          %s2836 = scalar_lea.sflag [#allocation4], %s2835
          %s2837 = sand.u32 %s292, 1
          %s2838 = smul.addr %s2837, 4
          %s2839 = scalar_lea.vmem [#allocation3], %s2838
          %2840 = dma.done %s2836, 64
        $region76: #{tpu_custom_call.1} parent=71 // pred_fallthru
          _
      $region72: #{tpu_custom_call.1} parent=5 // pred_fallthru
        _
    $region6: #{tpu_custom_call.1} parent=1 // loop_footer
      %s26 = sadd.s32 1, %s22
    $region7: #{tpu_custom_call.1} parent=1 // loop_footer_branch
      %21 = sbr.rel target = $region3
    $region8: #{tpu_custom_call.1} parent=1 // loop_exit
      _
    %2841 = vsyncpa [#allocation4], 1
    %s2842 = scalar_lea.sflag [#allocation4], 1
    %2843 = vsyncpa %s2842, 1

</llo_original>
